<compile_context>
chip_gen: v7x
topology: tpu7x:2x2x1
jax: 0.10.0
libtpu: 0.0.40
codegen_flags: <defaults>
</compile_context>

<pallas_src>
import functools
import math

import jax
import jax.numpy as jnp
from jax.experimental import pallas as pl
from jax.experimental.pallas import tpu as pltpu


def _mhsa_kernel(x_ref, wq_ref, bq_ref, wkvT_ref, bkvT_ref, wo_ref, bo_ref, o_ref,
                 kv_scr, *, n_head, q_tile):
    # x_ref:     (1, S, D)  bf16  one batch element (same block for every q-tile)
    # wq_ref:    (D, D)     bf16  wq * (1/sqrt(dh)), stored (in, out)
    # bq_ref:    (1, D)     f32   bq * (1/sqrt(dh))
    # wkvT_ref:  (2D, D)    bf16  [wk^T ; wv^T]  (out-major, so K^T/V^T come out directly)
    # bkvT_ref:  (2D, 1)    f32   [bk^T ; bv^T]  (column bias for the transposed projection)
    # wo_ref:    (D, D)     bf16  w_concat, stored (in, out)
    # bo_ref:    (1, D)     f32
    # o_ref:     (1, tq, D) f32   one query tile of the output
    # kv_scr:    (2D, S)    bf16  VMEM cache [K^T ; V^T], persists across q-tiles
    qt = pl.program_id(1)
    S = x_ref.shape[1]
    d_model = x_ref.shape[2]
    dh = d_model // n_head

    # ---- K/V projection for the full sequence, once per batch element, cached transposed
    @pl.when(qt == 0)
    def _project_kv():
        # kvT[i, s] = sum_d wkvT[i, d] * x[s, d]  ->  (2D, S), lane-dense over S.
        kvT = jax.lax.dot_general(
            wkvT_ref[...], x_ref[0],
            dimension_numbers=(((1,), (1,)), ((), ())),          # contract over d_model
            preferred_element_type=jnp.float32) + bkvT_ref[...]
        kv_scr[...] = kvT.astype(jnp.bfloat16)

    # ---- Q for this query tile only (even MXU work per grid step) ----------------------
    q_start = pl.multiple_of(qt * q_tile, q_tile)
    x_q = x_ref[0, pl.ds(q_start, q_tile), :]                    # (tq, D) bf16
    q = (jnp.dot(x_q, wq_ref[...], preferred_element_type=jnp.float32)
         + bq_ref[...]).astype(jnp.bfloat16)                     # (tq, D), pre-scaled

    # ---- per-head attention: one (tq, S) f32 score tile live at a time -----------------
    ctx_heads = []
    for h in range(n_head):
        q_h = q[:, h * dh:(h + 1) * dh]                          # (tq, dh) bf16
        k_h = kv_scr[pl.ds(h * dh, dh), :]                       # (dh, S)  bf16
        v_h = kv_scr[pl.ds(d_model + h * dh, dh), :]             # (dh, S)  bf16

        s = jnp.dot(q_h, k_h, preferred_element_type=jnp.float32)  # (tq, S) f32
        m = jnp.max(s, axis=-1, keepdims=True)
        p = jnp.exp(s - m)
        l = jnp.sum(p, axis=-1, keepdims=True)
        p = (p * pl.reciprocal(l, approx=True)).astype(jnp.bfloat16)

        # ctx_h[t, d] = sum_s p[t, s] * V[s, h*dh + d]   (contract over S, V stored transposed)
        ctx_h = jax.lax.dot_general(
            p, v_h, dimension_numbers=(((1,), (1,)), ((), ())),
            preferred_element_type=jnp.float32)                  # (tq, dh) f32
        ctx_heads.append(ctx_h.astype(jnp.bfloat16))

    # ---- single K=D output projection (no per-head K=dh micro-matmuls) -----------------
    ctx = jnp.concatenate(ctx_heads, axis=-1)                    # (tq, D) bf16
    out = jnp.dot(ctx, wo_ref[...], preferred_element_type=jnp.float32) + bo_ref[...]
    o_ref[0] = out.astype(o_ref.dtype)


def _vmem_limit_bytes(S, D, n_head, q_tile):
    """Working-set estimate with headroom, capped generation-aware (v7x=64MiB, v5e/v6e=128MiB)."""
    del n_head
    bf16, f32 = 2, 4
    weights = (D * D + 2 * D * D + D * D) * bf16                 # wq + [wk^T;wv^T] + wo
    biases = 2 * D * f32 + 2 * D * 128 * f32                     # bq/bo rows + lane-padded bkvT
    x_blk = S * D * bf16
    out_blk = q_tile * D * f32
    kv_cache = 2 * D * S * bf16                                  # [K^T ; V^T] scratch
    scores = q_tile * S * f32                                    # one head live at a time
    est = 2 * (weights + biases + x_blk + out_blk) + kv_cache + 8 * scores + (8 << 20)
    try:
        cap = int(pltpu.get_tpu_info().vmem_capacity_bytes)
    except Exception:
        cap = 128 << 20
    cap = (cap * 9) // 10                                        # headroom for compiler scratch
    return int(min(max(est, 32 << 20), cap))


def multi_head_self_attention(x, params, n_head, *, q_tile=None):
    """Self-attention (q = k = v = x): x is (B, S, D) f32; params hold (D, D) weights
    stored (in, out) and (1, D) biases, matching nn.Linear (y = x @ W.T + b)."""
    B, S, D = x.shape
    assert D % n_head == 0
    dh = D // n_head
    if q_tile is None:
        q_tile = S if S <= 128 else 128
    assert S % q_tile == 0
    assert q_tile == S or q_tile % 16 == 0, "q_tile must be a multiple of 16 (bf16 sublane tile)"
    num_qt = S // q_tile

    scale = 1.0 / math.sqrt(dh)
    x_bf = x.astype(jnp.bfloat16)                                # halve activation DMA
    wq = (params["wq"] * scale).astype(jnp.bfloat16)             # (D, D), scale folded in
    bq = (params["bq"] * scale).astype(jnp.float32)              # (1, D)
    wkvT = jnp.concatenate([params["wk"].T, params["wv"].T], axis=0).astype(jnp.bfloat16)  # (2D, D)
    bkvT = jnp.concatenate([params["bk"].T, params["bv"].T], axis=0).astype(jnp.float32)   # (2D, 1)
    wo = params["wo"].astype(jnp.bfloat16)                       # (D, D)
    bo = params["bo"].astype(jnp.float32)                        # (1, D)

    kernel = functools.partial(_mhsa_kernel, n_head=n_head, q_tile=q_tile)

    return pl.pallas_call(
        kernel,
        out_shape=jax.ShapeDtypeStruct((B, S, D), jnp.float32),
        grid_spec=pltpu.PrefetchScalarGridSpec(
            num_scalar_prefetch=0,
            grid=(B, num_qt),
            in_specs=[
                pl.BlockSpec((1, S, D), lambda b, t: (b, 0, 0)),      # x (full seq / batch, bf16)
                pl.BlockSpec((D, D), lambda b, t: (0, 0)),            # wq * scale
                pl.BlockSpec((1, D), lambda b, t: (0, 0)),            # bq * scale
                pl.BlockSpec((2 * D, D), lambda b, t: (0, 0)),        # [wk^T ; wv^T]
                pl.BlockSpec((2 * D, 1), lambda b, t: (0, 0)),        # [bk^T ; bv^T]
                pl.BlockSpec((D, D), lambda b, t: (0, 0)),            # w_concat
                pl.BlockSpec((1, D), lambda b, t: (0, 0)),            # b_concat
            ],
            out_specs=pl.BlockSpec((1, q_tile, D), lambda b, t: (b, t, 0)),
            scratch_shapes=[
                pltpu.VMEM((2 * D, S), jnp.bfloat16),                 # [K^T ; V^T] cache
            ],
        ),
        compiler_params=pltpu.CompilerParams(
            # Batch axis feeds megacore; the q-tile axis must stay sequential because the
            # K/V projection is computed at q-tile 0 and reused from scratch.
            dimension_semantics=("parallel", "arbitrary"),
            vmem_limit_bytes=_vmem_limit_bytes(S, D, n_head, q_tile),
        ),
    )(x_bf, wq, bq, wkvT, bkvT, wo, bo)


# ----------------------------- references for validation --------------------------------
def _reference_f32(x, params, n_head):
    """Pure-f32 reference mirroring the PyTorch forward exactly (mask=None)."""
    B, S, D = x.shape
    dh = D // n_head
    Q = x @ params["wq"] + params["bq"]
    K = x @ params["wk"] + params["bk"]
    V = x @ params["wv"] + params["bv"]

    def split(t):
        return t.reshape(B, S, n_head, dh).transpose(0, 2, 1, 3)

    Qh, Kh, Vh = split(Q), split(K), split(V)
    score = (Qh @ Kh.transpose(0, 1, 3, 2)) / math.sqrt(dh)
    score = jax.nn.softmax(score, axis=-1)
    ctx = (score @ Vh).transpose(0, 2, 1, 3).reshape(B, S, D)
    return ctx @ params["wo"] + params["bo"]


def _reference_matched(x, params, n_head):
    """Same math, but with the kernel's bf16 MXU-operand / f32-accumulate precision."""
    B, S, D = x.shape
    dh = D // n_head
    scale = 1.0 / math.sqrt(dh)
    bf = jnp.bfloat16

    def mm(a, w):
        return jnp.dot(a.astype(bf), w.astype(bf), preferred_element_type=jnp.float32)

    Q = mm(x, params["wq"] * scale) + params["bq"] * scale
    K = mm(x, params["wk"]) + params["bk"]
    V = mm(x, params["wv"]) + params["bv"]

    def split(t):
        return t.astype(bf).reshape(B, S, n_head, dh).transpose(0, 2, 1, 3)

    Qh, Kh, Vh = split(Q), split(K), split(V)
    s = jnp.einsum('bhqd,bhkd->bhqk', Qh, Kh, preferred_element_type=jnp.float32)
    p = jax.nn.softmax(s, axis=-1)
    ctx = jnp.einsum('bhqk,bhkd->bhqd', p.astype(bf), Vh, preferred_element_type=jnp.float32)
    ctx = ctx.transpose(0, 2, 1, 3).reshape(B, S, D).astype(bf)
    return jnp.dot(ctx, params["wo"].astype(bf),
                   preferred_element_type=jnp.float32) + params["bo"]


def init_params(key, d_model):
    """Deterministic init; shapes match nn.Linear(d_model, d_model), weights stored (in, out)."""
    keys = jax.random.split(key, 8)
    bound = 1.0 / math.sqrt(d_model)

    def w(k):
        return jax.random.uniform(k, (d_model, d_model), jnp.float32, -bound, bound)

    def b(k):
        return jax.random.uniform(k, (1, d_model), jnp.float32, -bound, bound)

    return {
        "wq": w(keys[0]), "bq": b(keys[1]),
        "wk": w(keys[2]), "bk": b(keys[3]),
        "wv": w(keys[4]), "bv": b(keys[5]),
        "wo": w(keys[6]), "bo": b(keys[7]),
    }


if __name__ == "__main__":
    # Small but lane-dense shapes: d_model = 128 (full lane width), 2 query tiles of 64.
    B, S, D, H = 2, 128, 128, 4

    key = jax.random.PRNGKey(0)
    kx, kp = jax.random.split(key)
    x = jax.random.normal(kx, (B, S, D), jnp.float32)
    params = init_params(kp, D)

    out = multi_head_self_attention(x, params, n_head=H, q_tile=64)
    out = jax.block_until_ready(out)
    assert out.shape == (B, S, D)

    ref_m = _reference_matched(x, params, H)   # same bf16-operand precision -> tight check
    ref_f = _reference_f32(x, params, H)       # PyTorch-faithful f32 -> bf16-level tolerance

    err_m = float(jnp.max(jnp.abs(out - ref_m)))
    err_f = float(jnp.max(jnp.abs(out - ref_f)))
    assert jnp.allclose(out, ref_m, atol=1e-2, rtol=1e-2), f"matched-precision mismatch: {err_m}"
    assert jnp.allclose(out, ref_f, atol=3e-2, rtol=3e-2), f"f32 reference mismatch: {err_f}"

    print("KERNEL_OK")
</pallas_src>

<mosaic_0001>
module attributes {stable_mosaic.version = 11 : i64} {
  func.func @_mhsa_kernel(%arg0: i32, %arg1: i32, %arg2: memref<1x128x128xbf16, #tpu.memory_space<vmem>>, %arg3: memref<128x128xbf16, #tpu.memory_space<vmem>>, %arg4: memref<1x128xf32, #tpu.memory_space<vmem>>, %arg5: memref<256x128xbf16, #tpu.memory_space<vmem>>, %arg6: memref<256x1xf32, #tpu.memory_space<vmem>>, %arg7: memref<128x128xbf16, #tpu.memory_space<vmem>>, %arg8: memref<1x128xf32, #tpu.memory_space<vmem>>, %arg9: memref<1x64x128xf32, #tpu.memory_space<vmem>>, %arg10: memref<256x128xbf16, #tpu.memory_space<vmem>>) attributes {dimension_semantics = [#tpu.dimension_semantics<parallel>, #tpu.dimension_semantics<arbitrary>], iteration_bounds = array<i64: 2, 2>, scalar_prefetch = 0 : i64, scratch_operands = 1 : i64, tpu.core_type = #tpu.core_type<tc>, window_params = [{transform_indices = @transform_0, window_bounds = array<i64: 1, 128, 128>}, {pipeline_mode = #tpu.pipeline_mode<synchronous>, transform_indices = @transform_1, window_bounds = array<i64: 128, 128>}, {pipeline_mode = #tpu.pipeline_mode<synchronous>, transform_indices = @transform_2, window_bounds = array<i64: 1, 128>}, {pipeline_mode = #tpu.pipeline_mode<synchronous>, transform_indices = @transform_3, window_bounds = array<i64: 256, 128>}, {pipeline_mode = #tpu.pipeline_mode<synchronous>, transform_indices = @transform_4, window_bounds = array<i64: 256, 1>}, {pipeline_mode = #tpu.pipeline_mode<synchronous>, transform_indices = @transform_5, window_bounds = array<i64: 128, 128>}, {pipeline_mode = #tpu.pipeline_mode<synchronous>, transform_indices = @transform_6, window_bounds = array<i64: 1, 128>}, {transform_indices = @transform_7, window_bounds = array<i64: 1, 64, 128>}]} {
    %c0_i32 = arith.constant 0 : i32
    %0 = arith.cmpi eq, %arg1, %c0_i32 : i32
    %1 = arith.extui %0 : i1 to i32
    %c0_i32_0 = arith.constant 0 : i32
    %2 = arith.cmpi ne, %1, %c0_i32_0 : i32
    scf.if %2 {
      %c0_39 = arith.constant 0 : index
      %c0_40 = arith.constant 0 : index
      %91 = vector.load %arg5[%c0_39, %c0_40] : memref<256x128xbf16, #tpu.memory_space<vmem>>, vector<256x128xbf16>
      %c0_41 = arith.constant 0 : index
      %c0_42 = arith.constant 0 : index
      %c0_43 = arith.constant 0 : index
      %92 = vector.load %arg2[%c0_41, %c0_42, %c0_43] : memref<1x128x128xbf16, #tpu.memory_space<vmem>>, vector<1x128x128xbf16>
      %93 = vector.shape_cast %92 : vector<1x128x128xbf16> to vector<128x128xbf16>
      %cst_44 = arith.constant dense<0.000000e+00> : vector<256x128xf32>
      %94 = tpu.matmul %91, %93, %cst_44 {dimension_numbers = #tpu.dot_dimension_numbers<[1], [1], [0], [0], [0, 0, 1, 0], [], []>} : vector<256x128xbf16>, vector<128x128xbf16>, vector<256x128xf32> -> vector<256x128xf32>
      %c0_45 = arith.constant 0 : index
      %c0_46 = arith.constant 0 : index
      %95 = vector.load %arg6[%c0_45, %c0_46] : memref<256x1xf32, #tpu.memory_space<vmem>>, vector<256x1xf32>
      %96 = vector.broadcast %95 : vector<256x1xf32> to vector<256x128xf32>
      %97 = arith.addf %94, %96 : vector<256x128xf32>
      %98 = arith.truncf %97 : vector<256x128xf32> to vector<256x128xbf16>
      %c0_47 = arith.constant 0 : index
      %c0_48 = arith.constant 0 : index
      %99 = vector.load %arg10[%c0_47, %c0_48] : memref<256x128xbf16, #tpu.memory_space<vmem>>, vector<256x128xbf16>
      tpu.vector_store %arg10[%c0_47, %c0_48], %98 {strides = array<i32>} : memref<256x128xbf16, #tpu.memory_space<vmem>>, vector<256x128xbf16>,
    } else {
    }
    %c64_i32 = arith.constant 64 : i32
    %3 = arith.muli %arg1, %c64_i32 : i32
    %4 = tpu.assume_multiple %3, 64 : i32
    %c0 = arith.constant 0 : index
    %5 = arith.index_cast %4 : i32 to index
    %c0_1 = arith.constant 0 : index
    %6 = vector.load %arg2[%c0, %5, %c0_1] : memref<1x128x128xbf16, #tpu.memory_space<vmem>>, vector<1x64x128xbf16>
    %7 = vector.shape_cast %6 : vector<1x64x128xbf16> to vector<64x128xbf16>
    %c0_2 = arith.constant 0 : index
    %c0_3 = arith.constant 0 : index
    %8 = vector.load %arg3[%c0_2, %c0_3] : memref<128x128xbf16, #tpu.memory_space<vmem>>, vector<128x128xbf16>
    %cst = arith.constant dense<0.000000e+00> : vector<64x128xf32>
    %9 = tpu.matmul %7, %8, %cst {dimension_numbers = #tpu.dot_dimension_numbers<[1], [0], [0], [1], [0, 0, 1, 1], [], []>} : vector<64x128xbf16>, vector<128x128xbf16>, vector<64x128xf32> -> vector<64x128xf32>
    %c0_4 = arith.constant 0 : index
    %c0_5 = arith.constant 0 : index
    %10 = vector.load %arg4[%c0_4, %c0_5] : memref<1x128xf32, #tpu.memory_space<vmem>>, vector<1x128xf32>
    %11 = vector.broadcast %10 : vector<1x128xf32> to vector<64x128xf32>
    %12 = arith.addf %9, %11 : vector<64x128xf32>
    %13 = arith.truncf %12 : vector<64x128xf32> to vector<64x128xbf16>
    %14 = vector.extract_strided_slice %13 {offsets = [0, 0], sizes = [64, 32], strides = [1, 1]} : vector<64x128xbf16> to vector<64x32xbf16>
    %c0_6 = arith.constant 0 : index
    %c0_7 = arith.constant 0 : index
    %15 = vector.load %arg10[%c0_6, %c0_7] : memref<256x128xbf16, #tpu.memory_space<vmem>>, vector<32x128xbf16>
    %c128 = arith.constant 128 : index
    %c0_8 = arith.constant 0 : index
    %16 = vector.load %arg10[%c128, %c0_8] : memref<256x128xbf16, #tpu.memory_space<vmem>>, vector<32x128xbf16>
    %cst_9 = arith.constant dense<0.000000e+00> : vector<64x128xf32>
    %17 = tpu.matmul %14, %15, %cst_9 {dimension_numbers = #tpu.dot_dimension_numbers<[1], [0], [0], [1], [0, 0, 1, 1], [], []>} : vector<64x32xbf16>, vector<32x128xbf16>, vector<64x128xf32> -> vector<64x128xf32>
    %cst_10 = arith.constant dense<0xFF800000> : vector<64xf32>
    %18 = vector.multi_reduction <maximumf>, %17, %cst_10 [1] : vector<64x128xf32> to vector<64xf32>
    %19 = vector.shape_cast %18 : vector<64xf32> to vector<64x1xf32>
    %20 = vector.broadcast %19 : vector<64x1xf32> to vector<64x128xf32>
    %21 = arith.subf %17, %20 : vector<64x128xf32>
    %22 = math.exp %21 : vector<64x128xf32>
    %cst_11 = arith.constant dense<0.000000e+00> : vector<64xf32>
    %23 = vector.multi_reduction <add>, %22, %cst_11 [1] : vector<64x128xf32> to vector<64xf32>
    %24 = vector.shape_cast %23 : vector<64xf32> to vector<64x1xf32>
    %25 = tpu.reciprocal %24 {approx = true} : vector<64x1xf32> -> vector<64x1xf32>
    %26 = vector.broadcast %25 : vector<64x1xf32> to vector<64x128xf32>
    %27 = arith.mulf %22, %26 : vector<64x128xf32>
    %28 = arith.truncf %27 : vector<64x128xf32> to vector<64x128xbf16>
    %cst_12 = arith.constant dense<0.000000e+00> : vector<64x32xf32>
    %29 = tpu.matmul %28, %16, %cst_12 {dimension_numbers = #tpu.dot_dimension_numbers<[1], [1], [0], [0], [0, 0, 1, 0], [], []>} : vector<64x128xbf16>, vector<32x128xbf16>, vector<64x32xf32> -> vector<64x32xf32>
    %30 = arith.truncf %29 : vector<64x32xf32> to vector<64x32xbf16>
    %31 = vector.extract_strided_slice %13 {offsets = [0, 32], sizes = [64, 32], strides = [1, 1]} : vector<64x128xbf16> to vector<64x32xbf16>
    %c32 = arith.constant 32 : index
    %c0_13 = arith.constant 0 : index
    %32 = vector.load %arg10[%c32, %c0_13] : memref<256x128xbf16, #tpu.memory_space<vmem>>, vector<32x128xbf16>
    %c160 = arith.constant 160 : index
    %c0_14 = arith.constant 0 : index
    %33 = vector.load %arg10[%c160, %c0_14] : memref<256x128xbf16, #tpu.memory_space<vmem>>, vector<32x128xbf16>
    %cst_15 = arith.constant dense<0.000000e+00> : vector<64x128xf32>
    %34 = tpu.matmul %31, %32, %cst_15 {dimension_numbers = #tpu.dot_dimension_numbers<[1], [0], [0], [1], [0, 0, 1, 1], [], []>} : vector<64x32xbf16>, vector<32x128xbf16>, vector<64x128xf32> -> vector<64x128xf32>
    %cst_16 = arith.constant dense<0xFF800000> : vector<64xf32>
    %35 = vector.multi_reduction <maximumf>, %34, %cst_16 [1] : vector<64x128xf32> to vector<64xf32>
    %36 = vector.shape_cast %35 : vector<64xf32> to vector<64x1xf32>
    %37 = vector.broadcast %36 : vector<64x1xf32> to vector<64x128xf32>
    %38 = arith.subf %34, %37 : vector<64x128xf32>
    %39 = math.exp %38 : vector<64x128xf32>
    %cst_17 = arith.constant dense<0.000000e+00> : vector<64xf32>
    %40 = vector.multi_reduction <add>, %39, %cst_17 [1] : vector<64x128xf32> to vector<64xf32>
    %41 = vector.shape_cast %40 : vector<64xf32> to vector<64x1xf32>
    %42 = tpu.reciprocal %41 {approx = true} : vector<64x1xf32> -> vector<64x1xf32>
    %43 = vector.broadcast %42 : vector<64x1xf32> to vector<64x128xf32>
    %44 = arith.mulf %39, %43 : vector<64x128xf32>
    %45 = arith.truncf %44 : vector<64x128xf32> to vector<64x128xbf16>
    %cst_18 = arith.constant dense<0.000000e+00> : vector<64x32xf32>
    %46 = tpu.matmul %45, %33, %cst_18 {dimension_numbers = #tpu.dot_dimension_numbers<[1], [1], [0], [0], [0, 0, 1, 0], [], []>} : vector<64x128xbf16>, vector<32x128xbf16>, vector<64x32xf32> -> vector<64x32xf32>
    %47 = arith.truncf %46 : vector<64x32xf32> to vector<64x32xbf16>
    %48 = vector.extract_strided_slice %13 {offsets = [0, 64], sizes = [64, 32], strides = [1, 1]} : vector<64x128xbf16> to vector<64x32xbf16>
    %c64 = arith.constant 64 : index
    %c0_19 = arith.constant 0 : index
    %49 = vector.load %arg10[%c64, %c0_19] : memref<256x128xbf16, #tpu.memory_space<vmem>>, vector<32x128xbf16>
    %c192 = arith.constant 192 : index
    %c0_20 = arith.constant 0 : index
    %50 = vector.load %arg10[%c192, %c0_20] : memref<256x128xbf16, #tpu.memory_space<vmem>>, vector<32x128xbf16>
    %cst_21 = arith.constant dense<0.000000e+00> : vector<64x128xf32>
    %51 = tpu.matmul %48, %49, %cst_21 {dimension_numbers = #tpu.dot_dimension_numbers<[1], [0], [0], [1], [0, 0, 1, 1], [], []>} : vector<64x32xbf16>, vector<32x128xbf16>, vector<64x128xf32> -> vector<64x128xf32>
    %cst_22 = arith.constant dense<0xFF800000> : vector<64xf32>
    %52 = vector.multi_reduction <maximumf>, %51, %cst_22 [1] : vector<64x128xf32> to vector<64xf32>
    %53 = vector.shape_cast %52 : vector<64xf32> to vector<64x1xf32>
    %54 = vector.broadcast %53 : vector<64x1xf32> to vector<64x128xf32>
    %55 = arith.subf %51, %54 : vector<64x128xf32>
    %56 = math.exp %55 : vector<64x128xf32>
    %cst_23 = arith.constant dense<0.000000e+00> : vector<64xf32>
    %57 = vector.multi_reduction <add>, %56, %cst_23 [1] : vector<64x128xf32> to vector<64xf32>
    %58 = vector.shape_cast %57 : vector<64xf32> to vector<64x1xf32>
    %59 = tpu.reciprocal %58 {approx = true} : vector<64x1xf32> -> vector<64x1xf32>
    %60 = vector.broadcast %59 : vector<64x1xf32> to vector<64x128xf32>
    %61 = arith.mulf %56, %60 : vector<64x128xf32>
    %62 = arith.truncf %61 : vector<64x128xf32> to vector<64x128xbf16>
    %cst_24 = arith.constant dense<0.000000e+00> : vector<64x32xf32>
    %63 = tpu.matmul %62, %50, %cst_24 {dimension_numbers = #tpu.dot_dimension_numbers<[1], [1], [0], [0], [0, 0, 1, 0], [], []>} : vector<64x128xbf16>, vector<32x128xbf16>, vector<64x32xf32> -> vector<64x32xf32>
    %64 = arith.truncf %63 : vector<64x32xf32> to vector<64x32xbf16>
    %65 = vector.extract_strided_slice %13 {offsets = [0, 96], sizes = [64, 32], strides = [1, 1]} : vector<64x128xbf16> to vector<64x32xbf16>
    %c96 = arith.constant 96 : index
    %c0_25 = arith.constant 0 : index
    %66 = vector.load %arg10[%c96, %c0_25] : memref<256x128xbf16, #tpu.memory_space<vmem>>, vector<32x128xbf16>
    %c224 = arith.constant 224 : index
    %c0_26 = arith.constant 0 : index
    %67 = vector.load %arg10[%c224, %c0_26] : memref<256x128xbf16, #tpu.memory_space<vmem>>, vector<32x128xbf16>
    %cst_27 = arith.constant dense<0.000000e+00> : vector<64x128xf32>
    %68 = tpu.matmul %65, %66, %cst_27 {dimension_numbers = #tpu.dot_dimension_numbers<[1], [0], [0], [1], [0, 0, 1, 1], [], []>} : vector<64x32xbf16>, vector<32x128xbf16>, vector<64x128xf32> -> vector<64x128xf32>
    %cst_28 = arith.constant dense<0xFF800000> : vector<64xf32>
    %69 = vector.multi_reduction <maximumf>, %68, %cst_28 [1] : vector<64x128xf32> to vector<64xf32>
    %70 = vector.shape_cast %69 : vector<64xf32> to vector<64x1xf32>
    %71 = vector.broadcast %70 : vector<64x1xf32> to vector<64x128xf32>
    %72 = arith.subf %68, %71 : vector<64x128xf32>
    %73 = math.exp %72 : vector<64x128xf32>
    %cst_29 = arith.constant dense<0.000000e+00> : vector<64xf32>
    %74 = vector.multi_reduction <add>, %73, %cst_29 [1] : vector<64x128xf32> to vector<64xf32>
    %75 = vector.shape_cast %74 : vector<64xf32> to vector<64x1xf32>
    %76 = tpu.reciprocal %75 {approx = true} : vector<64x1xf32> -> vector<64x1xf32>
    %77 = vector.broadcast %76 : vector<64x1xf32> to vector<64x128xf32>
    %78 = arith.mulf %73, %77 : vector<64x128xf32>
    %79 = arith.truncf %78 : vector<64x128xf32> to vector<64x128xbf16>
    %cst_30 = arith.constant dense<0.000000e+00> : vector<64x32xf32>
    %80 = tpu.matmul %79, %67, %cst_30 {dimension_numbers = #tpu.dot_dimension_numbers<[1], [1], [0], [0], [0, 0, 1, 0], [], []>} : vector<64x128xbf16>, vector<32x128xbf16>, vector<64x32xf32> -> vector<64x32xf32>
    %81 = arith.truncf %80 : vector<64x32xf32> to vector<64x32xbf16>
    %82 = tpu.concatenate %30, %47, %64, %81 in 1 : vector<64x32xbf16>, vector<64x32xbf16>, vector<64x32xbf16>, vector<64x32xbf16> -> vector<64x128xbf16>
    %c0_31 = arith.constant 0 : index
    %c0_32 = arith.constant 0 : index
    %83 = vector.load %arg7[%c0_31, %c0_32] : memref<128x128xbf16, #tpu.memory_space<vmem>>, vector<128x128xbf16>
    %cst_33 = arith.constant dense<0.000000e+00> : vector<64x128xf32>
    %84 = tpu.matmul %82, %83, %cst_33 {dimension_numbers = #tpu.dot_dimension_numbers<[1], [0], [0], [1], [0, 0, 1, 1], [], []>} : vector<64x128xbf16>, vector<128x128xbf16>, vector<64x128xf32> -> vector<64x128xf32>
    %c0_34 = arith.constant 0 : index
    %c0_35 = arith.constant 0 : index
    %85 = vector.load %arg8[%c0_34, %c0_35] : memref<1x128xf32, #tpu.memory_space<vmem>>, vector<1x128xf32>
    %86 = vector.broadcast %85 : vector<1x128xf32> to vector<64x128xf32>
    %87 = arith.addf %84, %86 : vector<64x128xf32>
    %c0_36 = arith.constant 0 : index
    %c0_37 = arith.constant 0 : index
    %c0_38 = arith.constant 0 : index
    %88 = vector.load %arg9[%c0_36, %c0_37, %c0_38] : memref<1x64x128xf32, #tpu.memory_space<vmem>>, vector<1x64x128xf32>
    %89 = vector.shape_cast %88 : vector<1x64x128xf32> to vector<64x128xf32>
    %90 = vector.shape_cast %87 : vector<64x128xf32> to vector<1x64x128xf32>
    tpu.vector_store %arg9[%c0_36, %c0_37, %c0_38], %90 {strides = array<i32>} : memref<1x64x128xf32, #tpu.memory_space<vmem>>, vector<1x64x128xf32>,
    return
  }
  func.func @transform_0(%arg0: i32, %arg1: i32) -> (i32, i32, i32) {
    %c0_i32 = arith.constant 0 : i32
    %c0_i32_0 = arith.constant 0 : i32
    %c0_i32_1 = arith.constant 0 : i32
    return %arg0, %c0_i32, %c0_i32_0 : i32, i32, i32
  }
  func.func @transform_1(%arg0: i32, %arg1: i32) -> (i32, i32) {
    %c0_i32 = arith.constant 0 : i32
    %c0_i32_0 = arith.constant 0 : i32
    %c0_i32_1 = arith.constant 0 : i32
    return %c0_i32, %c0_i32_0 : i32, i32
  }
  func.func @transform_2(%arg0: i32, %arg1: i32) -> (i32, i32) {
    %c0_i32 = arith.constant 0 : i32
    %c0_i32_0 = arith.constant 0 : i32
    %c0_i32_1 = arith.constant 0 : i32
    return %c0_i32, %c0_i32_0 : i32, i32
  }
  func.func @transform_3(%arg0: i32, %arg1: i32) -> (i32, i32) {
    %c0_i32 = arith.constant 0 : i32
    %c0_i32_0 = arith.constant 0 : i32
    %c0_i32_1 = arith.constant 0 : i32
    return %c0_i32, %c0_i32_0 : i32, i32
  }
  func.func @transform_4(%arg0: i32, %arg1: i32) -> (i32, i32) {
    %c0_i32 = arith.constant 0 : i32
    %c0_i32_0 = arith.constant 0 : i32
    %c0_i32_1 = arith.constant 0 : i32
    return %c0_i32, %c0_i32_0 : i32, i32
  }
  func.func @transform_5(%arg0: i32, %arg1: i32) -> (i32, i32) {
    %c0_i32 = arith.constant 0 : i32
    %c0_i32_0 = arith.constant 0 : i32
    %c0_i32_1 = arith.constant 0 : i32
    return %c0_i32, %c0_i32_0 : i32, i32
  }
  func.func @transform_6(%arg0: i32, %arg1: i32) -> (i32, i32) {
    %c0_i32 = arith.constant 0 : i32
    %c0_i32_0 = arith.constant 0 : i32
    %c0_i32_1 = arith.constant 0 : i32
    return %c0_i32, %c0_i32_0 : i32, i32
  }
  func.func @transform_7(%arg0: i32, %arg1: i32) -> (i32, i32, i32) {
    %c0_i32 = arith.constant 0 : i32
    %c0_i32_0 = arith.constant 0 : i32
    return %arg0, %arg1, %c0_i32 : i32, i32, i32
  }
}

</mosaic_0001>

<llo_original>
// kernel: tpu_custom_call.1
$region0: #{tpu_custom_call.1}
  #allocation0 [shape = 'u32[]', space=smem, size = 0x4, offset = 0x4, fixed_abs, tag = 'smem constant byte address 0x4 - core index']
  #allocation1 [shape = 'u32[144,128]{1,0:T(1,128)}', space=vmem, size = 0x12000, scoped, tag = 'internal scratch']
  #allocation2 [shape = 'bf16[256,128]{1,0:T(16,128)(2,1)}', space=vmem, size = 0x10000, scoped, tag = 'scratch operand']
  %s0 = inlined_call_operand.vmem [shape: bf16[2,128,128], index: 0, kind: input, shape index: {}]
  %s1 = inlined_call_operand.hbm [shape: bf16[128,128], index: 1, kind: input, shape index: {}]
  %s2 = inlined_call_operand.vmem [shape: f32[1,128], index: 2, kind: input, shape index: {}]
  %s3 = inlined_call_operand.vmem [shape: bf16[256,128], index: 3, kind: input, shape index: {}]
  %s4 = inlined_call_operand.vmem [shape: f32[256,1], index: 4, kind: input, shape index: {}]
  %s5 = inlined_call_operand.hbm [shape: bf16[128,128], index: 5, kind: input, shape index: {}]
  %s6 = inlined_call_operand.vmem [shape: f32[1,128], index: 6, kind: input, shape index: {}]
  %s7 = inlined_call_operand.hbm [shape: f32[2,128,128], index: 7, kind: output, shape index: {}]
  %s8 = sld [smem:[#allocation0]]
  $region73: #{tpu_custom_call.1} parent=0
    _
  %s10 = ssub.s32 1, %s8
  %s11 = scalar_select 0, %s10, %s8
  $region1: #{tpu_custom_call.1} parent=0
    #allocation3 [shape = 'u8[32768]{0}', space=vmem, size = 0x8000, scoped, tag = 'input window, operand 1, single buffered']
    #allocation4 [shape = 's32[2]{0}', space=sflag, size = 0x8, scoped, tag = 'scoped memory for tpu_custom_call.1']
    #allocation5 [shape = 's32[2]{0}', space=sflag, size = 0x8, scoped, tag = 'scoped memory for tpu_custom_call.1']
    #allocation6 [shape = 'u8[32768]{0}', space=vmem, size = 0x8000, scoped, tag = 'input window, operand 5, single buffered']
    #allocation7 [shape = 's32[1]{0}', space=sflag, size = 0x4, scoped, tag = 'scoped memory for tpu_custom_call.1']
    #allocation8 [shape = 'u8[65536]{0}', space=vmem, size = 0x10000, scoped, tag = 'output window, operand 0']
    %12 = vsyncpa [#allocation4], 0
    %13 = vsyncpa [#allocation7], 0
    %14 = vsyncpa [#allocation5], 0
    %s15 = scalar_lea.sflag [#allocation5], 1
    %16 = vsyncpa %s15, 0
    loop: start=0, step=1, limit=6
    $region2: #{tpu_custom_call.1} parent=1 // loop_pre_header
      _
    $region3: #{tpu_custom_call.1} parent=1 // loop_header
      %s18 = sphi 0, %s22
      %p19 = scmp.ge.s32.totalorder %s18, 6
      %s25 = sphi 0, %s37
      %s26 = sphi 0, %s33
      %s27 = sphi 0, %s25
      %s28 = sphi 0, %s26
      %s29 = sphi 0, %s27
      %s30 = sphi 0, %s28
      %s40 = sphi 0, %s42
      %s43 = sphi 0, %s40
      %s44 = sphi 0, %s43
      %s60 = sphi 0, %s44
      %s64 = sphi 0, %s64
      %s66 = sphi 0, %s64
      %s67 = sphi 0, %s66
      %s81 = sphi 0, %s67
      %s85 = sphi 0, %s85
      %s87 = sphi 0, %s85
      %s88 = sphi 0, %s87
      %s102 = sphi 0, %s88
      %s106 = sphi 0, %s106
      %s108 = sphi 0, %s106
      %s109 = sphi 0, %s108
      %s123 = sphi 0, %s109
      %s127 = sphi 0, %s127
      %s129 = sphi 0, %s127
      %s130 = sphi 0, %s129
      %s144 = sphi 0, %s130
      %s148 = sphi 0, %s148
      %s150 = sphi 0, %s148
      %s151 = sphi 0, %s150
      %s165 = sphi 0, %s151
      %s169 = sphi 0, %s169
      %s171 = sphi 0, %s169
      %s172 = sphi 0, %s171
      %s186 = sphi 0, %s172
      %s194 = sphi 0, %s196
      %s197 = sphi 0, %s194
      %s198 = sphi 0, %s197
      %s214 = sphi 0, %s198
    $region4: #{tpu_custom_call.1} parent=1 // loop_header_branch
      %21 = sbr.rel (%p19) target = $region8
    $region5: #{tpu_custom_call.1} parent=1 // loop_body
      %s23 = ssub.s32 %s18, 1
      %s24 = ssub.s32 %s18, 2
      %s31 = sadd.s32 1, %s26
      %p32 = scmp.ge.s32.totalorder %s31, 2
      %s33 = scalar_select %p32, 0, %s31
      %s34 = sadd.s32 1, %s25
      %s35 = scalar_select %p32, %s34, %s25
      %p36 = scmp.ge.s32.totalorder %s35, 2
      %s37 = scalar_select %p36, 0, %s35
      %s38 = ssub.s32 %s25, %s37
      %p39 = scmp.eq.s32.totalorder %s38, 0
      %s41 = sadd.s32 %s40, 1
      %s42 = scalar_select %p39, %s40, %s41
      %p45 = pneg %p39
      %p46 = scmp.eq.s32.totalorder %s18, 3
      %p47 = por %p45, %p46
      %p48 = scmp.ne.s32.totalorder %s40, %s43
      %p49 = scmp.eq.s32.totalorder %s18, 0
      %p50 = por %p48, %p49
      %p51 = scmp.ne.s32.totalorder %s40, %s43
      %p52 = scmp.eq.s32.totalorder %s23, 3
      %p53 = por %p51, %p52
      %p54 = scmp.ne.s32.totalorder %s43, %s44
      %p55 = scmp.eq.s32.totalorder %s23, 0
      %p56 = por %p54, %p55
      %p57 = scmp.ne.s32.totalorder %s43, %s44
      %p58 = scmp.eq.s32.totalorder %s24, 3
      %p59 = por %p57, %p58
      %p61 = scmp.ne.s32.totalorder %s44, %s60
      %p62 = scmp.eq.s32.totalorder %s24, 0
      %p63 = por %p61, %p62
      %s65 = sadd.s32 %s64, 1
      %p68 = scmp.eq.s32.totalorder %s18, 3
      %p69 = scmp.ne.s32.totalorder %s64, %s66
      %p70 = scmp.eq.s32.totalorder %s18, 0
      %p71 = por %p69, %p70
      %p72 = scmp.ne.s32.totalorder %s64, %s66
      %p73 = scmp.eq.s32.totalorder %s23, 3
      %p74 = por %p72, %p73
      %p75 = scmp.ne.s32.totalorder %s66, %s67
      %p76 = scmp.eq.s32.totalorder %s23, 0
      %p77 = por %p75, %p76
      %p78 = scmp.ne.s32.totalorder %s66, %s67
      %p79 = scmp.eq.s32.totalorder %s24, 3
      %p80 = por %p78, %p79
      %p82 = scmp.ne.s32.totalorder %s67, %s81
      %p83 = scmp.eq.s32.totalorder %s24, 0
      %p84 = por %p82, %p83
      %s86 = sadd.s32 %s85, 1
      %p89 = scmp.eq.s32.totalorder %s18, 3
      %p90 = scmp.ne.s32.totalorder %s85, %s87
      %p91 = scmp.eq.s32.totalorder %s18, 0
      %p92 = por %p90, %p91
      %p93 = scmp.ne.s32.totalorder %s85, %s87
      %p94 = scmp.eq.s32.totalorder %s23, 3
      %p95 = por %p93, %p94
      %p96 = scmp.ne.s32.totalorder %s87, %s88
      %p97 = scmp.eq.s32.totalorder %s23, 0
      %p98 = por %p96, %p97
      %p99 = scmp.ne.s32.totalorder %s87, %s88
      %p100 = scmp.eq.s32.totalorder %s24, 3
      %p101 = por %p99, %p100
      %p103 = scmp.ne.s32.totalorder %s88, %s102
      %p104 = scmp.eq.s32.totalorder %s24, 0
      %p105 = por %p103, %p104
      %s107 = sadd.s32 %s106, 1
      %p110 = scmp.eq.s32.totalorder %s18, 3
      %p111 = scmp.ne.s32.totalorder %s106, %s108
      %p112 = scmp.eq.s32.totalorder %s18, 0
      %p113 = por %p111, %p112
      %p114 = scmp.ne.s32.totalorder %s106, %s108
      %p115 = scmp.eq.s32.totalorder %s23, 3
      %p116 = por %p114, %p115
      %p117 = scmp.ne.s32.totalorder %s108, %s109
      %p118 = scmp.eq.s32.totalorder %s23, 0
      %p119 = por %p117, %p118
      %p120 = scmp.ne.s32.totalorder %s108, %s109
      %p121 = scmp.eq.s32.totalorder %s24, 3
      %p122 = por %p120, %p121
      %p124 = scmp.ne.s32.totalorder %s109, %s123
      %p125 = scmp.eq.s32.totalorder %s24, 0
      %p126 = por %p124, %p125
      %s128 = sadd.s32 %s127, 1
      %p131 = scmp.eq.s32.totalorder %s18, 3
      %p132 = scmp.ne.s32.totalorder %s127, %s129
      %p133 = scmp.eq.s32.totalorder %s18, 0
      %p134 = por %p132, %p133
      %p135 = scmp.ne.s32.totalorder %s127, %s129
      %p136 = scmp.eq.s32.totalorder %s23, 3
      %p137 = por %p135, %p136
      %p138 = scmp.ne.s32.totalorder %s129, %s130
      %p139 = scmp.eq.s32.totalorder %s23, 0
      %p140 = por %p138, %p139
      %p141 = scmp.ne.s32.totalorder %s129, %s130
      %p142 = scmp.eq.s32.totalorder %s24, 3
      %p143 = por %p141, %p142
      %p145 = scmp.ne.s32.totalorder %s130, %s144
      %p146 = scmp.eq.s32.totalorder %s24, 0
      %p147 = por %p145, %p146
      %s149 = sadd.s32 %s148, 1
      %p152 = scmp.eq.s32.totalorder %s18, 3
      %p153 = scmp.ne.s32.totalorder %s148, %s150
      %p154 = scmp.eq.s32.totalorder %s18, 0
      %p155 = por %p153, %p154
      %p156 = scmp.ne.s32.totalorder %s148, %s150
      %p157 = scmp.eq.s32.totalorder %s23, 3
      %p158 = por %p156, %p157
      %p159 = scmp.ne.s32.totalorder %s150, %s151
      %p160 = scmp.eq.s32.totalorder %s23, 0
      %p161 = por %p159, %p160
      %p162 = scmp.ne.s32.totalorder %s150, %s151
      %p163 = scmp.eq.s32.totalorder %s24, 3
      %p164 = por %p162, %p163
      %p166 = scmp.ne.s32.totalorder %s151, %s165
      %p167 = scmp.eq.s32.totalorder %s24, 0
      %p168 = por %p166, %p167
      %s170 = sadd.s32 %s169, 1
      %p173 = scmp.eq.s32.totalorder %s18, 3
      %p174 = scmp.ne.s32.totalorder %s169, %s171
      %p175 = scmp.eq.s32.totalorder %s18, 0
      %p176 = por %p174, %p175
      %p177 = scmp.ne.s32.totalorder %s169, %s171
      %p178 = scmp.eq.s32.totalorder %s23, 3
      %p179 = por %p177, %p178
      %p180 = scmp.ne.s32.totalorder %s171, %s172
      %p181 = scmp.eq.s32.totalorder %s23, 0
      %p182 = por %p180, %p181
      %p183 = scmp.ne.s32.totalorder %s171, %s172
      %p184 = scmp.eq.s32.totalorder %s24, 3
      %p185 = por %p183, %p184
      %p187 = scmp.ne.s32.totalorder %s172, %s186
      %p188 = scmp.eq.s32.totalorder %s24, 0
      %p189 = por %p187, %p188
      %s190 = ssub.s32 %s25, %s37
      %s191 = ssub.s32 %s26, %s33
      %s192 = sor.u32 %s190, %s191
      %p193 = scmp.eq.s32.totalorder %s192, 0
      %s195 = sadd.s32 %s194, 1
      %s196 = scalar_select %p193, %s194, %s195
      %p199 = pneg %p193
      %p200 = scmp.eq.s32.totalorder %s18, 3
      %p201 = por %p199, %p200
      %p202 = scmp.ne.s32.totalorder %s194, %s197
      %p203 = scmp.eq.s32.totalorder %s18, 0
      %p204 = por %p202, %p203
      %p205 = scmp.ne.s32.totalorder %s194, %s197
      %p206 = scmp.eq.s32.totalorder %s23, 3
      %p207 = por %p205, %p206
      %p208 = scmp.ne.s32.totalorder %s197, %s198
      %p209 = scmp.eq.s32.totalorder %s23, 0
      %p210 = por %p208, %p209
      %p211 = scmp.ne.s32.totalorder %s197, %s198
      %p212 = scmp.eq.s32.totalorder %s24, 3
      %p213 = por %p211, %p212
      %p215 = scmp.ne.s32.totalorder %s198, %s214
      %p216 = scmp.eq.s32.totalorder %s24, 0
      %p217 = por %p215, %p216
      %p218 = scmp.le.s32.totalorder 1, %s18
      %p219 = scmp.lt.s32.totalorder %s18, 5
      %p220 = pnand %p218, %p219
      %p221 = pneg %p220
      // Predicated region
      $region9: #{tpu_custom_call.1} parent=5 // pred_check
        _
      $region10: #{tpu_custom_call.1} parent=5 // pred_check_branch
        %223 = sbr.rel (%p220) target = $region12
      $region11: #{tpu_custom_call.1} parent=5 // pred_region
        %s224 = ssub.s32 %s18, 1
        // Predicated region
        $region13: #{tpu_custom_call.1} parent=11 // pred_check
          %p225 = pneg %p77
        $region14: #{tpu_custom_call.1} parent=11 // pred_check_branch
          %227 = sbr.rel (%p225) target = $region16
        $region15: #{tpu_custom_call.1} parent=11 // pred_region
          %s229 = ssub.s32 1024, 1024
          %230 = vsyncadd [#allocation4], %s229
          %s231 = sshll.u32 [#allocation3], 4
          %s232 = int_to_ptr.vmem [resolvable:$true] %s231
          %237 = dma.hbm_to_vmem [thread:$0]  %s1, 1024, %s232, [#allocation4], 64, 64, 4
        $region16: #{tpu_custom_call.1} parent=11 // pred_fallthru
          _
        // Predicated region
        $region17: #{tpu_custom_call.1} parent=11 // pred_check
          %p238 = pneg %p98
        $region18: #{tpu_custom_call.1} parent=11 // pred_check_branch
          %240 = sbr.rel (%p238) target = $region20
        $region19: #{tpu_custom_call.1} parent=11 // pred_region
          _
        $region20: #{tpu_custom_call.1} parent=11 // pred_fallthru
          _
        // Predicated region
        $region21: #{tpu_custom_call.1} parent=11 // pred_check
          %p241 = pneg %p119
        $region22: #{tpu_custom_call.1} parent=11 // pred_check_branch
          %243 = sbr.rel (%p241) target = $region24
        $region23: #{tpu_custom_call.1} parent=11 // pred_region
          _
        $region24: #{tpu_custom_call.1} parent=11 // pred_fallthru
          _
        // Predicated region
        $region25: #{tpu_custom_call.1} parent=11 // pred_check
          %p244 = pneg %p140
        $region26: #{tpu_custom_call.1} parent=11 // pred_check_branch
          %246 = sbr.rel (%p244) target = $region28
        $region27: #{tpu_custom_call.1} parent=11 // pred_region
          _
        $region28: #{tpu_custom_call.1} parent=11 // pred_fallthru
          _
        // Predicated region
        $region29: #{tpu_custom_call.1} parent=11 // pred_check
          %p247 = pneg %p161
        $region30: #{tpu_custom_call.1} parent=11 // pred_check_branch
          %249 = sbr.rel (%p247) target = $region32
        $region31: #{tpu_custom_call.1} parent=11 // pred_region
          %s251 = ssub.s32 1024, 1024
          %252 = vsyncadd [#allocation7], %s251
          %s253 = sshll.u32 [#allocation6], 4
          %s254 = int_to_ptr.vmem [resolvable:$true] %s253
          %259 = dma.hbm_to_vmem [thread:$0]  %s5, 1024, %s254, [#allocation7], 64, 64, 4
        $region32: #{tpu_custom_call.1} parent=11 // pred_fallthru
          _
        // Predicated region
        $region33: #{tpu_custom_call.1} parent=11 // pred_check
          %p260 = pneg %p182
        $region34: #{tpu_custom_call.1} parent=11 // pred_check_branch
          %262 = sbr.rel (%p260) target = $region36
        $region35: #{tpu_custom_call.1} parent=11 // pred_region
          _
        $region36: #{tpu_custom_call.1} parent=11 // pred_fallthru
          _
      $region12: #{tpu_custom_call.1} parent=5 // pred_fallthru
        _
      %p263 = scmp.lt.s32.totalorder %s18, 4
      // Predicated region
      $region37: #{tpu_custom_call.1} parent=5 // pred_check
        %p264 = pneg %p263
      $region38: #{tpu_custom_call.1} parent=5 // pred_check_branch
        %266 = sbr.rel (%p264) target = $region40
      $region39: #{tpu_custom_call.1} parent=5 // pred_region
        // Predicated region
        $region41: #{tpu_custom_call.1} parent=39 // pred_check
          %p267 = pneg %p50
        $region42: #{tpu_custom_call.1} parent=39 // pred_check_branch
          %269 = sbr.rel (%p267) target = $region44
        $region43: #{tpu_custom_call.1} parent=39 // pred_region
          %p270 = scmp.lt.s32.totalorder %s25, 1
          %s271 = scalar_select %p270, %s25, 1
          %s272 = smul.addr %s271, 16
          %s273 = smul.addr %s272, 4
          %s274 = scalar_lea.vmem %s0, %s273
        $region44: #{tpu_custom_call.1} parent=39 // pred_fallthru
          _
      $region40: #{tpu_custom_call.1} parent=5 // pred_fallthru
        _
      %p275 = scmp.le.s32.totalorder 1, %s18
      %p276 = scmp.lt.s32.totalorder %s18, 5
      %p277 = pnand %p275, %p276
      %p278 = pneg %p277
      // Predicated region
      $region45: #{tpu_custom_call.1} parent=5 // pred_check
        _
      $region46: #{tpu_custom_call.1} parent=5 // pred_check_branch
        %280 = sbr.rel (%p277) target = $region48
      $region47: #{tpu_custom_call.1} parent=5 // pred_region
        %s281 = ssub.s32 %s18, 1
        // Predicated region
        $region49: #{tpu_custom_call.1} parent=47 // pred_check
          %p282 = pneg %p77
        $region50: #{tpu_custom_call.1} parent=47 // pred_check_branch
          %284 = sbr.rel (%p282) target = $region52
        $region51: #{tpu_custom_call.1} parent=47 // pred_region
          %285 = dma.done [#allocation4], 1024
        $region52: #{tpu_custom_call.1} parent=47 // pred_fallthru
          _
        // Predicated region
        $region53: #{tpu_custom_call.1} parent=47 // pred_check
          %p286 = pneg %p161
        $region54: #{tpu_custom_call.1} parent=47 // pred_check_branch
          %288 = sbr.rel (%p286) target = $region56
        $region55: #{tpu_custom_call.1} parent=47 // pred_region
          %289 = dma.done [#allocation7], 1024
        $region56: #{tpu_custom_call.1} parent=47 // pred_fallthru
          _
        %p290 = scmp.lt.s32.totalorder %s27, 1
        %s291 = scalar_select %p290, %s27, 1
        %s292 = smul.addr %s291, 16
        %s293 = smul.addr %s292, 4
        %s294 = scalar_lea.vmem %s0, %s293
        %p295 = pneg %p56
        %p296 = pneg %p53
        %p297 = pneg %p77
        %p298 = pneg %p74
        %p299 = pneg %p98
        %p300 = pneg %p95
        %p301 = pneg %p119
        %p302 = pneg %p116
        %p303 = pneg %p140
        %p304 = pneg %p137
        %p305 = pneg %p161
        %p306 = pneg %p158
        %p307 = pneg %p182
        %p308 = pneg %p179
        %p309 = pneg %p210
        %p310 = pneg %p207
        %s311 = sand.u32 %s197, 1
        %s312 = scalar_lea.sflag [#allocation5], %s311
        %s313 = sand.u32 %s197, 1
        %s314 = smul.addr %s313, 64
        %s315 = scalar_lea.vmem [#allocation8], %s314
        %p316 = scmp.lt.s32.totalorder %s27, 1
        %s317 = scalar_select %p316, %s27, 1
        %s318 = smul.addr %s317, 16
        %s319 = smul.addr %s318, 4
        %s320 = scalar_lea.vmem %s0, %s319
        %s321 = smul.u32 8, %s28
        %p323 = scmp.eq.s32.totalorder %s28, 0
        // Predicated region
        $region57: #{tpu_custom_call.1} parent=47 // pred_check
          %p324 = pneg %p323
        $region58: #{tpu_custom_call.1} parent=47 // pred_check_branch
          %326 = sbr.rel (%p324) target = $region60
        $region59: #{tpu_custom_call.1} parent=47 // pred_region
          %v327 = vld [vmem:[%s3] sm:$0xf]
          %v328 = vld [vmem:[%s3 + $0x4] sm:$0xf]
          %v329 = vld [vmem:[%s3 + $0x8] sm:$0xf]
          %v330 = vld [vmem:[%s3 + $0xc] sm:$0xf]
          %v331 = vld [vmem:[%s3 + $0x10] sm:$0xf]
          %v332 = vld [vmem:[%s3 + $0x14] sm:$0xf]
          %v333 = vld [vmem:[%s3 + $0x18] sm:$0xf]
          %v334 = vld [vmem:[%s3 + $0x1c] sm:$0xf]
          %v335 = vld [vmem:[%s3 + $0x20] sm:$0xf]
          %v336 = vld [vmem:[%s3 + $0x24] sm:$0xf]
          %v337 = vld [vmem:[%s3 + $0x28] sm:$0xf]
          %v338 = vld [vmem:[%s3 + $0x2c] sm:$0xf]
          %v339 = vld [vmem:[%s3 + $0x30] sm:$0xf]
          %v340 = vld [vmem:[%s3 + $0x34] sm:$0xf]
          %v341 = vld [vmem:[%s3 + $0x38] sm:$0xf]
          %v342 = vld [vmem:[%s3 + $0x3c] sm:$0xf]
          %v343 = vld [vmem:[%s3 + $0x40] sm:$0xf]
          %v344 = vld [vmem:[%s3 + $0x44] sm:$0xf]
          %v345 = vld [vmem:[%s3 + $0x48] sm:$0xf]
          %v346 = vld [vmem:[%s3 + $0x4c] sm:$0xf]
          %v347 = vld [vmem:[%s3 + $0x50] sm:$0xf]
          %v348 = vld [vmem:[%s3 + $0x54] sm:$0xf]
          %v349 = vld [vmem:[%s3 + $0x58] sm:$0xf]
          %v350 = vld [vmem:[%s3 + $0x5c] sm:$0xf]
          %v351 = vld [vmem:[%s3 + $0x60] sm:$0xf]
          %v352 = vld [vmem:[%s3 + $0x64] sm:$0xf]
          %v353 = vld [vmem:[%s3 + $0x68] sm:$0xf]
          %v354 = vld [vmem:[%s3 + $0x6c] sm:$0xf]
          %v355 = vld [vmem:[%s3 + $0x70] sm:$0xf]
          %v356 = vld [vmem:[%s3 + $0x74] sm:$0xf]
          %v357 = vld [vmem:[%s3 + $0x78] sm:$0xf]
          %v358 = vld [vmem:[%s3 + $0x7c] sm:$0xf]
          %v359 = vld [vmem:[%s320] sm:$0xf]
          %v360 = vld [vmem:[%s320 + $0x4] sm:$0xf]
          %v361 = vld [vmem:[%s320 + $0x8] sm:$0xf]
          %v362 = vld [vmem:[%s320 + $0xc] sm:$0xf]
          %v363 = vld [vmem:[%s320 + $0x10] sm:$0xf]
          %v364 = vld [vmem:[%s320 + $0x14] sm:$0xf]
          %v365 = vld [vmem:[%s320 + $0x18] sm:$0xf]
          %v366 = vld [vmem:[%s320 + $0x1c] sm:$0xf]
          %v367 = vld [vmem:[%s320 + $0x20] sm:$0xf]
          %v368 = vld [vmem:[%s320 + $0x24] sm:$0xf]
          %v369 = vld [vmem:[%s320 + $0x28] sm:$0xf]
          %v370 = vld [vmem:[%s320 + $0x2c] sm:$0xf]
          %v371 = vld [vmem:[%s320 + $0x30] sm:$0xf]
          %v372 = vld [vmem:[%s320 + $0x34] sm:$0xf]
          %v373 = vld [vmem:[%s320 + $0x38] sm:$0xf]
          %v374 = vld [vmem:[%s320 + $0x3c] sm:$0xf]
          %v375 = vld [vmem:[%s4] sm:$0xff]
          %v376 = vld [vmem:[%s4 + $0x8] sm:$0xff]
          %v377 = vld [vmem:[%s4 + $0x10] sm:$0xff]
          %v378 = vld [vmem:[%s4 + $0x18] sm:$0xff]
          %v379 = vld [vmem:[%s4 + $0x20] sm:$0xff]
          %v380 = vld [vmem:[%s4 + $0x28] sm:$0xff]
          %v381 = vld [vmem:[%s4 + $0x30] sm:$0xff]
          %v382 = vld [vmem:[%s4 + $0x38] sm:$0xff]
          %v383 = vld [vmem:[%s4 + $0x40] sm:$0xff]
          %v384 = vld [vmem:[%s4 + $0x48] sm:$0xff]
          %v385 = vld [vmem:[%s4 + $0x50] sm:$0xff]
          %v386 = vld [vmem:[%s4 + $0x58] sm:$0xff]
          %v387 = vld [vmem:[%s4 + $0x60] sm:$0xff]
          %v388 = vld [vmem:[%s4 + $0x68] sm:$0xff]
          %v389 = vld [vmem:[%s4 + $0x70] sm:$0xff]
          %v390 = vld [vmem:[%s4 + $0x78] sm:$0xff]
          %v391 = vld [vmem:[%s4 + $0x80] sm:$0xff]
          %v392 = vld [vmem:[%s4 + $0x88] sm:$0xff]
          %v393 = vld [vmem:[%s4 + $0x90] sm:$0xff]
          %v394 = vld [vmem:[%s4 + $0x98] sm:$0xff]
          %v395 = vld [vmem:[%s4 + $0xa0] sm:$0xff]
          %v396 = vld [vmem:[%s4 + $0xa8] sm:$0xff]
          %v397 = vld [vmem:[%s4 + $0xb0] sm:$0xff]
          %v398 = vld [vmem:[%s4 + $0xb8] sm:$0xff]
          %v399 = vld [vmem:[%s4 + $0xc0] sm:$0xff]
          %v400 = vld [vmem:[%s4 + $0xc8] sm:$0xff]
          %v401 = vld [vmem:[%s4 + $0xd0] sm:$0xff]
          %v402 = vld [vmem:[%s4 + $0xd8] sm:$0xff]
          %v403 = vld [vmem:[%s4 + $0xe0] sm:$0xff]
          %v404 = vld [vmem:[%s4 + $0xe8] sm:$0xff]
          %v405 = vld [vmem:[%s4 + $0xf0] sm:$0xff]
          %v406 = vld [vmem:[%s4 + $0xf8] sm:$0xff]
          %408 = vset.pattern.permute.xlu0 0
          %409 = vperm.xlu0 %408, %v375
          %v410 = vpop.permute.xlu0 %409
          %413 = vset.pattern.permute.xlu0 0
          %414 = vperm.xlu0 %413, %v376
          %v415 = vpop.permute.xlu0 %414
          %418 = vset.pattern.permute.xlu0 0
          %419 = vperm.xlu0 %418, %v377
          %v420 = vpop.permute.xlu0 %419
          %423 = vset.pattern.permute.xlu0 0
          %424 = vperm.xlu0 %423, %v378
          %v425 = vpop.permute.xlu0 %424
          %428 = vset.pattern.permute.xlu0 0
          %429 = vperm.xlu0 %428, %v379
          %v430 = vpop.permute.xlu0 %429
          %433 = vset.pattern.permute.xlu0 0
          %434 = vperm.xlu0 %433, %v380
          %v435 = vpop.permute.xlu0 %434
          %438 = vset.pattern.permute.xlu0 0
          %439 = vperm.xlu0 %438, %v381
          %v440 = vpop.permute.xlu0 %439
          %443 = vset.pattern.permute.xlu0 0
          %444 = vperm.xlu0 %443, %v382
          %v445 = vpop.permute.xlu0 %444
          %448 = vset.pattern.permute.xlu0 0
          %449 = vperm.xlu0 %448, %v383
          %v450 = vpop.permute.xlu0 %449
          %453 = vset.pattern.permute.xlu0 0
          %454 = vperm.xlu0 %453, %v384
          %v455 = vpop.permute.xlu0 %454
          %458 = vset.pattern.permute.xlu0 0
          %459 = vperm.xlu0 %458, %v385
          %v460 = vpop.permute.xlu0 %459
          %463 = vset.pattern.permute.xlu0 0
          %464 = vperm.xlu0 %463, %v386
          %v465 = vpop.permute.xlu0 %464
          %468 = vset.pattern.permute.xlu0 0
          %469 = vperm.xlu0 %468, %v387
          %v470 = vpop.permute.xlu0 %469
          %473 = vset.pattern.permute.xlu0 0
          %474 = vperm.xlu0 %473, %v388
          %v475 = vpop.permute.xlu0 %474
          %478 = vset.pattern.permute.xlu0 0
          %479 = vperm.xlu0 %478, %v389
          %v480 = vpop.permute.xlu0 %479
          %483 = vset.pattern.permute.xlu0 0
          %484 = vperm.xlu0 %483, %v390
          %v485 = vpop.permute.xlu0 %484
          %488 = vset.pattern.permute.xlu0 0
          %489 = vperm.xlu0 %488, %v391
          %v490 = vpop.permute.xlu0 %489
          %493 = vset.pattern.permute.xlu0 0
          %494 = vperm.xlu0 %493, %v392
          %v495 = vpop.permute.xlu0 %494
          %498 = vset.pattern.permute.xlu0 0
          %499 = vperm.xlu0 %498, %v393
          %v500 = vpop.permute.xlu0 %499
          %503 = vset.pattern.permute.xlu0 0
          %504 = vperm.xlu0 %503, %v394
          %v505 = vpop.permute.xlu0 %504
          %508 = vset.pattern.permute.xlu0 0
          %509 = vperm.xlu0 %508, %v395
          %v510 = vpop.permute.xlu0 %509
          %513 = vset.pattern.permute.xlu0 0
          %514 = vperm.xlu0 %513, %v396
          %v515 = vpop.permute.xlu0 %514
          %518 = vset.pattern.permute.xlu0 0
          %519 = vperm.xlu0 %518, %v397
          %v520 = vpop.permute.xlu0 %519
          %523 = vset.pattern.permute.xlu0 0
          %524 = vperm.xlu0 %523, %v398
          %v525 = vpop.permute.xlu0 %524
          %528 = vset.pattern.permute.xlu0 0
          %529 = vperm.xlu0 %528, %v399
          %v530 = vpop.permute.xlu0 %529
          %533 = vset.pattern.permute.xlu0 0
          %534 = vperm.xlu0 %533, %v400
          %v535 = vpop.permute.xlu0 %534
          %538 = vset.pattern.permute.xlu0 0
          %539 = vperm.xlu0 %538, %v401
          %v540 = vpop.permute.xlu0 %539
          %543 = vset.pattern.permute.xlu0 0
          %544 = vperm.xlu0 %543, %v402
          %v545 = vpop.permute.xlu0 %544
          %548 = vset.pattern.permute.xlu0 0
          %549 = vperm.xlu0 %548, %v403
          %v550 = vpop.permute.xlu0 %549
          %553 = vset.pattern.permute.xlu0 0
          %554 = vperm.xlu0 %553, %v404
          %v555 = vpop.permute.xlu0 %554
          %558 = vset.pattern.permute.xlu0 0
          %559 = vperm.xlu0 %558, %v405
          %v560 = vpop.permute.xlu0 %559
          %563 = vset.pattern.permute.xlu0 0
          %564 = vperm.xlu0 %563, %v406
          %v565 = vpop.permute.xlu0 %564
          %v599 = vunpack.c.l.b16 %v327
          %v600 = vunpack.c.l.b16 %v328
          %v601 = vunpack.c.l.b16 %v329
          %v602 = vunpack.c.l.b16 %v330
          %v603 = vunpack.c.l.b16 %v331
          %v604 = vunpack.c.l.b16 %v332
          %v605 = vunpack.c.l.b16 %v333
          %v606 = vunpack.c.l.b16 %v334
          %v607 = vunpack.c.l.b16 %v335
          %v608 = vunpack.c.l.b16 %v336
          %v609 = vunpack.c.l.b16 %v337
          %v610 = vunpack.c.l.b16 %v338
          %v611 = vunpack.c.l.b16 %v339
          %v612 = vunpack.c.l.b16 %v340
          %v613 = vunpack.c.l.b16 %v341
          %v614 = vunpack.c.l.b16 %v342
          %v615 = vunpack.c.l.b16 %v343
          %v616 = vunpack.c.l.b16 %v344
          %v617 = vunpack.c.l.b16 %v345
          %v618 = vunpack.c.l.b16 %v346
          %v619 = vunpack.c.l.b16 %v347
          %v620 = vunpack.c.l.b16 %v348
          %v621 = vunpack.c.l.b16 %v349
          %v622 = vunpack.c.l.b16 %v350
          %v623 = vunpack.c.l.b16 %v351
          %v624 = vunpack.c.l.b16 %v352
          %v625 = vunpack.c.l.b16 %v353
          %v626 = vunpack.c.l.b16 %v354
          %v627 = vunpack.c.l.b16 %v355
          %v628 = vunpack.c.l.b16 %v356
          %v629 = vunpack.c.l.b16 %v357
          %v630 = vunpack.c.l.b16 %v358
          %v631 = vpack.c.b16 %v600, %v599
          %v632 = vpack.c.b16 %v602, %v601
          %v633 = vpack.c.b16 %v604, %v603
          %v634 = vpack.c.b16 %v606, %v605
          %v635 = vpack.c.b16 %v608, %v607
          %v636 = vpack.c.b16 %v610, %v609
          %v637 = vpack.c.b16 %v612, %v611
          %v638 = vpack.c.b16 %v614, %v613
          %v639 = vpack.c.b16 %v616, %v615
          %v640 = vpack.c.b16 %v618, %v617
          %v641 = vpack.c.b16 %v620, %v619
          %v642 = vpack.c.b16 %v622, %v621
          %v643 = vpack.c.b16 %v624, %v623
          %v644 = vpack.c.b16 %v626, %v625
          %v645 = vpack.c.b16 %v628, %v627
          %v646 = vpack.c.b16 %v630, %v629
          %v679 = vunpack.c.l.b16 %v359
          %v680 = vunpack.c.l.b16 %v360
          %v681 = vunpack.c.l.b16 %v361
          %v682 = vunpack.c.l.b16 %v362
          %v683 = vunpack.c.l.b16 %v363
          %v684 = vunpack.c.l.b16 %v364
          %v685 = vunpack.c.l.b16 %v365
          %v686 = vunpack.c.l.b16 %v366
          %v687 = vunpack.c.l.b16 %v367
          %v688 = vunpack.c.l.b16 %v368
          %v689 = vunpack.c.l.b16 %v369
          %v690 = vunpack.c.l.b16 %v370
          %v691 = vunpack.c.l.b16 %v371
          %v692 = vunpack.c.l.b16 %v372
          %v693 = vunpack.c.l.b16 %v373
          %v694 = vunpack.c.l.b16 %v374
          %v695 = vpack.c.b16 %v680, %v679
          %v696 = vpack.c.b16 %v682, %v681
          %v697 = vpack.c.b16 %v684, %v683
          %v698 = vpack.c.b16 %v686, %v685
          %v699 = vpack.c.b16 %v688, %v687
          %v700 = vpack.c.b16 %v690, %v689
          %v701 = vpack.c.b16 %v692, %v691
          %v702 = vpack.c.b16 %v694, %v693
          %711 = vmatprep.subr.bf16.mxu0 0
          %712 = vmatpush1.bf16.xpose.msra.mxu0 %v695
          %713 = vmatprep.subr.bf16.mxu0 0
          %714 = vmatpush1.bf16.xpose.msra.mxu0 %v696
          %715 = vmatprep.subr.bf16.mxu0 0
          %716 = vmatpush1.bf16.xpose.msra.mxu0 %v697
          %717 = vmatprep.subr.bf16.mxu0 0
          %718 = vmatpush1.bf16.xpose.msra.mxu0 %v698
          %719 = vmatprep.subr.bf16.mxu0 0
          %720 = vmatpush1.bf16.xpose.msra.mxu0 %v699
          %721 = vmatprep.subr.bf16.mxu0 0
          %722 = vmatpush1.bf16.xpose.msra.mxu0 %v700
          %723 = vmatprep.subr.bf16.mxu0 0
          %724 = vmatpush1.bf16.xpose.msra.mxu0 %v701
          %725 = vmatprep.subr.bf16.mxu0 0
          %726 = vmatpush1.bf16.xpose.msra.mxu0 %v702
          %727 = vmatprep.subr.bf16.mxu0 0
          %728 = vmatpush1.bf16.xpose.msra.mxu0 0
          %729 = vmatprep.subr.bf16.mxu0 0
          %730 = vmatpush1.bf16.xpose.msra.mxu0 0
          %731 = vmatprep.subr.bf16.mxu0 0
          %732 = vmatpush1.bf16.xpose.msra.mxu0 0
          %733 = vmatprep.subr.bf16.mxu0 0
          %734 = vmatpush1.bf16.xpose.msra.mxu0 0
          %735 = vmatprep.subr.bf16.mxu0 0
          %736 = vmatpush1.bf16.xpose.msra.mxu0 0
          %737 = vmatprep.subr.bf16.mxu0 0
          %738 = vmatpush1.bf16.xpose.msra.mxu0 0
          %739 = vmatprep.subr.bf16.mxu0 0
          %740 = vmatpush1.bf16.xpose.msra.mxu0 0
          %741 = vmatprep.subr.bf16.mxu0 0
          %742 = vmatpush1.bf16.xpose.msra.mxu0 0
          %743 = vmatprep.mubr.bf16.mxu0 0
          %744 = vmatmul.mubr.bf16.gmra.mrb[0].mxu0 %v631
          %v745 = vpop.f32.mrb[0].mxu0
          %v746 = vadd.f32 %v410, %v745
          %v747 = vpop.f32.mrb[0].mxu0
          %v748 = vpop.f32.mrb[0].mxu0
          %v749 = vadd.f32 %v415, %v748
          %v750 = vpop.f32.mrb[0].mxu0
          %751 = vmatprep.mubr.bf16.mxu0 0
          %752 = vmatmul.mubr.bf16.gmra.mrb[0].mxu0 %v632
          %v753 = vpop.f32.mrb[0].mxu0
          %v754 = vadd.f32 %v420, %v753
          %v755 = vpop.f32.mrb[0].mxu0
          %v756 = vpop.f32.mrb[0].mxu0
          %v757 = vadd.f32 %v425, %v756
          %v758 = vpop.f32.mrb[0].mxu0
          %759 = vmatprep.mubr.bf16.mxu0 0
          %760 = vmatmul.mubr.bf16.gmra.mrb[0].mxu0 %v633
          %v761 = vpop.f32.mrb[0].mxu0
          %v762 = vadd.f32 %v430, %v761
          %v763 = vpop.f32.mrb[0].mxu0
          %v764 = vpop.f32.mrb[0].mxu0
          %v765 = vadd.f32 %v435, %v764
          %v766 = vpop.f32.mrb[0].mxu0
          %767 = vmatprep.mubr.bf16.mxu0 0
          %768 = vmatmul.mubr.bf16.gmra.mrb[0].mxu0 %v634
          %v769 = vpop.f32.mrb[0].mxu0
          %v770 = vadd.f32 %v440, %v769
          %v771 = vpop.f32.mrb[0].mxu0
          %v772 = vpop.f32.mrb[0].mxu0
          %v773 = vadd.f32 %v445, %v772
          %v774 = vpop.f32.mrb[0].mxu0
          %775 = vmatprep.mubr.bf16.mxu0 0
          %776 = vmatmul.mubr.bf16.gmra.mrb[0].mxu0 %v635
          %v777 = vpop.f32.mrb[0].mxu0
          %v778 = vadd.f32 %v450, %v777
          %v779 = vpop.f32.mrb[0].mxu0
          %v780 = vpop.f32.mrb[0].mxu0
          %v781 = vadd.f32 %v455, %v780
          %v782 = vpop.f32.mrb[0].mxu0
          %783 = vmatprep.mubr.bf16.mxu0 0
          %784 = vmatmul.mubr.bf16.gmra.mrb[0].mxu0 %v636
          %v785 = vpop.f32.mrb[0].mxu0
          %v786 = vadd.f32 %v460, %v785
          %v787 = vpop.f32.mrb[0].mxu0
          %v788 = vpop.f32.mrb[0].mxu0
          %v789 = vadd.f32 %v465, %v788
          %v790 = vpop.f32.mrb[0].mxu0
          %791 = vmatprep.mubr.bf16.mxu0 0
          %792 = vmatmul.mubr.bf16.gmra.mrb[0].mxu0 %v637
          %v793 = vpop.f32.mrb[0].mxu0
          %v794 = vadd.f32 %v470, %v793
          %v795 = vpop.f32.mrb[0].mxu0
          %v796 = vpop.f32.mrb[0].mxu0
          %v797 = vadd.f32 %v475, %v796
          %v798 = vpop.f32.mrb[0].mxu0
          %799 = vmatprep.mubr.bf16.mxu0 0
          %800 = vmatmul.mubr.bf16.gmra.mrb[0].mxu0 %v638
          %v801 = vpop.f32.mrb[0].mxu0
          %v802 = vadd.f32 %v480, %v801
          %v803 = vpop.f32.mrb[0].mxu0
          %v804 = vpop.f32.mrb[0].mxu0
          %v805 = vadd.f32 %v485, %v804
          %v806 = vpop.f32.mrb[0].mxu0
          %807 = vmatprep.mubr.bf16.mxu0 0
          %808 = vmatmul.mubr.bf16.gmra.mrb[0].mxu0 %v639
          %v809 = vpop.f32.mrb[0].mxu0
          %v810 = vadd.f32 %v490, %v809
          %v811 = vpop.f32.mrb[0].mxu0
          %v812 = vpop.f32.mrb[0].mxu0
          %v813 = vadd.f32 %v495, %v812
          %v814 = vpop.f32.mrb[0].mxu0
          %815 = vmatprep.mubr.bf16.mxu0 0
          %816 = vmatmul.mubr.bf16.gmra.mrb[0].mxu0 %v640
          %v817 = vpop.f32.mrb[0].mxu0
          %v818 = vadd.f32 %v500, %v817
          %v819 = vpop.f32.mrb[0].mxu0
          %v820 = vpop.f32.mrb[0].mxu0
          %v821 = vadd.f32 %v505, %v820
          %v822 = vpop.f32.mrb[0].mxu0
          %823 = vmatprep.mubr.bf16.mxu0 0
          %824 = vmatmul.mubr.bf16.gmra.mrb[0].mxu0 %v641
          %v825 = vpop.f32.mrb[0].mxu0
          %v826 = vadd.f32 %v510, %v825
          %v827 = vpop.f32.mrb[0].mxu0
          %v828 = vpop.f32.mrb[0].mxu0
          %v829 = vadd.f32 %v515, %v828
          %v830 = vpop.f32.mrb[0].mxu0
          %831 = vmatprep.mubr.bf16.mxu0 0
          %832 = vmatmul.mubr.bf16.gmra.mrb[0].mxu0 %v642
          %v833 = vpop.f32.mrb[0].mxu0
          %v834 = vadd.f32 %v520, %v833
          %v835 = vpop.f32.mrb[0].mxu0
          %v836 = vpop.f32.mrb[0].mxu0
          %v837 = vadd.f32 %v525, %v836
          %v838 = vpop.f32.mrb[0].mxu0
          %839 = vmatprep.mubr.bf16.mxu0 0
          %840 = vmatmul.mubr.bf16.gmra.mrb[0].mxu0 %v643
          %v841 = vpop.f32.mrb[0].mxu0
          %v842 = vadd.f32 %v530, %v841
          %v843 = vpop.f32.mrb[0].mxu0
          %v844 = vpop.f32.mrb[0].mxu0
          %v845 = vadd.f32 %v535, %v844
          %v846 = vpop.f32.mrb[0].mxu0
          %847 = vmatprep.mubr.bf16.mxu0 0
          %848 = vmatmul.mubr.bf16.gmra.mrb[0].mxu0 %v644
          %v849 = vpop.f32.mrb[0].mxu0
          %v850 = vadd.f32 %v540, %v849
          %v851 = vpop.f32.mrb[0].mxu0
          %v852 = vpop.f32.mrb[0].mxu0
          %v853 = vadd.f32 %v545, %v852
          %v854 = vpop.f32.mrb[0].mxu0
          %855 = vmatprep.mubr.bf16.mxu0 0
          %856 = vmatmul.mubr.bf16.gmra.mrb[0].mxu0 %v645
          %v857 = vpop.f32.mrb[0].mxu0
          %v858 = vadd.f32 %v550, %v857
          %v859 = vpop.f32.mrb[0].mxu0
          %v860 = vpop.f32.mrb[0].mxu0
          %v861 = vadd.f32 %v555, %v860
          %v862 = vpop.f32.mrb[0].mxu0
          %863 = vmatprep.mubr.bf16.mxu0 0
          %864 = vmatmul.mubr.bf16.gmra.mrb[0].mxu0 %v646
          %v865 = vpop.f32.mrb[0].mxu0
          %v866 = vadd.f32 %v560, %v865
          %v867 = vpop.f32.mrb[0].mxu0
          %v868 = vpop.f32.mrb[0].mxu0
          %v869 = vadd.f32 %v565, %v868
          %v870 = vpop.f32.mrb[0].mxu0
          %871 = vdwg.mxu0
          %v872 = vpack.c.bf16 %v749, %v746
          %v873 = vpack.c.bf16 %v757, %v754
          %v874 = vpack.c.bf16 %v765, %v762
          %v875 = vpack.c.bf16 %v773, %v770
          %v876 = vpack.c.bf16 %v781, %v778
          %v877 = vpack.c.bf16 %v789, %v786
          %v878 = vpack.c.bf16 %v797, %v794
          %v879 = vpack.c.bf16 %v805, %v802
          %v880 = vpack.c.bf16 %v813, %v810
          %v881 = vpack.c.bf16 %v821, %v818
          %v882 = vpack.c.bf16 %v829, %v826
          %v883 = vpack.c.bf16 %v837, %v834
          %v884 = vpack.c.bf16 %v845, %v842
          %v885 = vpack.c.bf16 %v853, %v850
          %v886 = vpack.c.bf16 %v861, %v858
          %v887 = vpack.c.bf16 %v869, %v866
          %888 = vst [vmem:[#allocation2] sm:$0xff] %v872
          %889 = vst [vmem:[#allocation2 + $0x8] sm:$0xff] %v873
          %890 = vst [vmem:[#allocation2 + $0x10] sm:$0xff] %v874
          %891 = vst [vmem:[#allocation2 + $0x18] sm:$0xff] %v875
          %892 = vst [vmem:[#allocation2 + $0x20] sm:$0xff] %v876
          %893 = vst [vmem:[#allocation2 + $0x28] sm:$0xff] %v877
          %894 = vst [vmem:[#allocation2 + $0x30] sm:$0xff] %v878
          %895 = vst [vmem:[#allocation2 + $0x38] sm:$0xff] %v879
          %896 = vst [vmem:[#allocation2 + $0x40] sm:$0xff] %v880
          %897 = vst [vmem:[#allocation2 + $0x48] sm:$0xff] %v881
          %898 = vst [vmem:[#allocation2 + $0x50] sm:$0xff] %v882
          %899 = vst [vmem:[#allocation2 + $0x58] sm:$0xff] %v883
          %900 = vst [vmem:[#allocation2 + $0x60] sm:$0xff] %v884
          %901 = vst [vmem:[#allocation2 + $0x68] sm:$0xff] %v885
          %902 = vst [vmem:[#allocation2 + $0x70] sm:$0xff] %v886
          %903 = vst [vmem:[#allocation2 + $0x78] sm:$0xff] %v887
        $region60: #{tpu_custom_call.1} parent=47 // pred_fallthru
          _
        %s904 = smul.u32 %s28, 64
        %s905 = sshra.s32 %s904, 3
        %s906 = sand.u32 %s904, 7
        %s907 = smul.addr %s905, 4
        %s908 = scalar_lea.vmem %s320, %s907
        %v909 = vld [vmem:[%s908] sm:$0xf]
        %v910 = vld [vmem:[%s908 + $0x4] sm:$0xf]
        %v911 = vld [vmem:[%s908 + $0x8] sm:$0xf]
        %v912 = vld [vmem:[%s908 + $0xc] sm:$0xf]
        %v913 = vld [vmem:[%s908 + $0x10] sm:$0xf]
        %v914 = vld [vmem:[%s908 + $0x14] sm:$0xf]
        %v915 = vld [vmem:[%s908 + $0x18] sm:$0xf]
        %v916 = vld [vmem:[%s908 + $0x1c] sm:$0xf]
        %v917 = vld [vmem:[#allocation3] sm:$0xf]
        %v918 = vld [vmem:[#allocation3 + $0x4] sm:$0xf]
        %v919 = vld [vmem:[#allocation3 + $0x8] sm:$0xf]
        %v920 = vld [vmem:[#allocation3 + $0xc] sm:$0xf]
        %v921 = vld [vmem:[#allocation3 + $0x10] sm:$0xf]
        %v922 = vld [vmem:[#allocation3 + $0x14] sm:$0xf]
        %v923 = vld [vmem:[#allocation3 + $0x18] sm:$0xf]
        %v924 = vld [vmem:[#allocation3 + $0x1c] sm:$0xf]
        %v925 = vld [vmem:[#allocation3 + $0x20] sm:$0xf]
        %v926 = vld [vmem:[#allocation3 + $0x24] sm:$0xf]
        %v927 = vld [vmem:[#allocation3 + $0x28] sm:$0xf]
        %v928 = vld [vmem:[#allocation3 + $0x2c] sm:$0xf]
        %v929 = vld [vmem:[#allocation3 + $0x30] sm:$0xf]
        %v930 = vld [vmem:[#allocation3 + $0x34] sm:$0xf]
        %v931 = vld [vmem:[#allocation3 + $0x38] sm:$0xf]
        %v932 = vld [vmem:[#allocation3 + $0x3c] sm:$0xf]
        %v933 = vld [vmem:[%s2] sm:$0x1]
        %v935 = vlaneseq
        %v936 = vshrl.u32 %v935, 7
        %v937 = vsub.s32 0, %v936
        %v938 = vrot.slane %v933, %v937
        %v948 = vunpack.c.l.b16 %v909
        %v949 = vunpack.c.l.b16 %v910
        %v950 = vunpack.c.l.b16 %v911
        %v951 = vunpack.c.l.b16 %v912
        %v952 = vunpack.c.l.b16 %v913
        %v953 = vunpack.c.l.b16 %v914
        %v954 = vunpack.c.l.b16 %v915
        %v955 = vunpack.c.l.b16 %v916
        %v956 = vpack.c.b16 %v949, %v948
        %v957 = vpack.c.b16 %v951, %v950
        %v958 = vpack.c.b16 %v953, %v952
        %v959 = vpack.c.b16 %v955, %v954
        %v980 = vunpack.c.l.b16 %v917
        %v981 = vunpack.c.l.b16 %v918
        %v982 = vunpack.c.l.b16 %v919
        %v983 = vunpack.c.l.b16 %v920
        %v984 = vunpack.c.l.b16 %v921
        %v985 = vunpack.c.l.b16 %v922
        %v986 = vunpack.c.l.b16 %v923
        %v987 = vunpack.c.l.b16 %v924
        %v988 = vunpack.c.l.b16 %v925
        %v989 = vunpack.c.l.b16 %v926
        %v990 = vunpack.c.l.b16 %v927
        %v991 = vunpack.c.l.b16 %v928
        %v992 = vunpack.c.l.b16 %v929
        %v993 = vunpack.c.l.b16 %v930
        %v994 = vunpack.c.l.b16 %v931
        %v995 = vunpack.c.l.b16 %v932
        %v996 = vpack.c.b16 %v981, %v980
        %v997 = vpack.c.b16 %v983, %v982
        %v998 = vpack.c.b16 %v985, %v984
        %v999 = vpack.c.b16 %v987, %v986
        %v1000 = vpack.c.b16 %v989, %v988
        %v1001 = vpack.c.b16 %v991, %v990
        %v1002 = vpack.c.b16 %v993, %v992
        %v1003 = vpack.c.b16 %v995, %v994
        %1012 = vmatprep.subr.bf16.mxu0 0
        %1013 = vmatpush1.bf16.msra.mxu0 %v996
        %1014 = vmatprep.subr.bf16.mxu0 0
        %1015 = vmatpush1.bf16.msra.mxu0 %v997
        %1016 = vmatprep.subr.bf16.mxu0 0
        %1017 = vmatpush1.bf16.msra.mxu0 %v998
        %1018 = vmatprep.subr.bf16.mxu0 0
        %1019 = vmatpush1.bf16.msra.mxu0 %v999
        %1020 = vmatprep.subr.bf16.mxu0 0
        %1021 = vmatpush1.bf16.msra.mxu0 %v1000
        %1022 = vmatprep.subr.bf16.mxu0 0
        %1023 = vmatpush1.bf16.msra.mxu0 %v1001
        %1024 = vmatprep.subr.bf16.mxu0 0
        %1025 = vmatpush1.bf16.msra.mxu0 %v1002
        %1026 = vmatprep.subr.bf16.mxu0 0
        %1027 = vmatpush1.bf16.msra.mxu0 %v1003
        %1028 = vmatprep.subr.bf16.mxu0 0
        %1029 = vmatpush1.bf16.msra.mxu0 0
        %1030 = vmatprep.subr.bf16.mxu0 0
        %1031 = vmatpush1.bf16.msra.mxu0 0
        %1032 = vmatprep.subr.bf16.mxu0 0
        %1033 = vmatpush1.bf16.msra.mxu0 0
        %1034 = vmatprep.subr.bf16.mxu0 0
        %1035 = vmatpush1.bf16.msra.mxu0 0
        %1036 = vmatprep.subr.bf16.mxu0 0
        %1037 = vmatpush1.bf16.msra.mxu0 0
        %1038 = vmatprep.subr.bf16.mxu0 0
        %1039 = vmatpush1.bf16.msra.mxu0 0
        %1040 = vmatprep.subr.bf16.mxu0 0
        %1041 = vmatpush1.bf16.msra.mxu0 0
        %1042 = vmatprep.subr.bf16.mxu0 0
        %1043 = vmatpush1.bf16.msra.mxu0 0
        %1044 = vmatprep.mubr.bf16.mxu0 0
        %1045 = vmatmul.mubr.bf16.gmra.mrb[0].mxu0 %v956
        %v1046 = vpop.f32.mrb[0].mxu0
        %v1047 = vadd.f32 %v938, %v1046
        %v1048 = vpop.f32.mrb[0].mxu0
        %v1049 = vpop.f32.mrb[0].mxu0
        %v1050 = vadd.f32 %v938, %v1049
        %v1051 = vpop.f32.mrb[0].mxu0
        %1052 = vmatprep.mubr.bf16.mxu0 0
        %1053 = vmatmul.mubr.bf16.gmra.mrb[0].mxu0 %v957
        %v1054 = vpop.f32.mrb[0].mxu0
        %v1055 = vadd.f32 %v938, %v1054
        %v1056 = vpop.f32.mrb[0].mxu0
        %v1057 = vpop.f32.mrb[0].mxu0
        %v1058 = vadd.f32 %v938, %v1057
        %v1059 = vpop.f32.mrb[0].mxu0
        %1060 = vmatprep.mubr.bf16.mxu0 0
        %1061 = vmatmul.mubr.bf16.gmra.mrb[0].mxu0 %v958
        %v1062 = vpop.f32.mrb[0].mxu0
        %v1063 = vadd.f32 %v938, %v1062
        %v1064 = vpop.f32.mrb[0].mxu0
        %v1065 = vpop.f32.mrb[0].mxu0
        %v1066 = vadd.f32 %v938, %v1065
        %v1067 = vpop.f32.mrb[0].mxu0
        %1068 = vmatprep.mubr.bf16.mxu0 0
        %1069 = vmatmul.mubr.bf16.gmra.mrb[0].mxu0 %v959
        %v1070 = vpop.f32.mrb[0].mxu0
        %v1071 = vadd.f32 %v938, %v1070
        %v1072 = vpop.f32.mrb[0].mxu0
        %v1073 = vpop.f32.mrb[0].mxu0
        %v1074 = vadd.f32 %v938, %v1073
        %v1075 = vpop.f32.mrb[0].mxu0
        %1076 = vdwg.mxu0
        %v1077 = vpack.c.bf16 %v1050, %v1047
        %v1078 = vpack.c.bf16 %v1058, %v1055
        %v1079 = vpack.c.bf16 %v1066, %v1063
        %v1080 = vpack.c.bf16 %v1074, %v1071
        %v1081 = vld [vmem:[#allocation2] sm:$0xff]
        %v1082 = vld [vmem:[#allocation2 + $0x8] sm:$0xff]
        %v1083 = vld [vmem:[#allocation2 + $0x40] sm:$0xff]
        %v1084 = vld [vmem:[#allocation2 + $0x48] sm:$0xff]
        %vm1085 = vcmask 261120
        %v1087 = vsel %vm1085, %v1077, 0
        %v1090 = vsel %vm1085, %v1078, 0
        %v1093 = vsel %vm1085, %v1079, 0
        %v1096 = vsel %vm1085, %v1080, 0
        %1098 = vmatprep.subr.bf16.mxu0 0
        %1099 = vmatpush1.bf16.msra.mxu0 %v1081
        %1100 = vmatprep.subr.bf16.mxu0 0
        %1101 = vmatpush1.bf16.msra.mxu0 %v1082
        %1102 = vmatprep.subr.bf16.mxu0 0
        %1103 = vmatpush1.bf16.msra.mxu0 0
        %1104 = vmatprep.subr.bf16.mxu0 0
        %1105 = vmatpush1.bf16.msra.mxu0 0
        %1106 = vmatprep.subr.bf16.mxu0 0
        %1107 = vmatpush1.bf16.msra.mxu0 0
        %1108 = vmatprep.subr.bf16.mxu0 0
        %1109 = vmatpush1.bf16.msra.mxu0 0
        %1110 = vmatprep.subr.bf16.mxu0 0
        %1111 = vmatpush1.bf16.msra.mxu0 0
        %1112 = vmatprep.subr.bf16.mxu0 0
        %1113 = vmatpush1.bf16.msra.mxu0 0
        %1114 = vmatprep.subr.bf16.mxu0 0
        %1115 = vmatpush1.bf16.msra.mxu0 0
        %1116 = vmatprep.subr.bf16.mxu0 0
        %1117 = vmatpush1.bf16.msra.mxu0 0
        %1118 = vmatprep.subr.bf16.mxu0 0
        %1119 = vmatpush1.bf16.msra.mxu0 0
        %1120 = vmatprep.subr.bf16.mxu0 0
        %1121 = vmatpush1.bf16.msra.mxu0 0
        %1122 = vmatprep.subr.bf16.mxu0 0
        %1123 = vmatpush1.bf16.msra.mxu0 0
        %1124 = vmatprep.subr.bf16.mxu0 0
        %1125 = vmatpush1.bf16.msra.mxu0 0
        %1126 = vmatprep.subr.bf16.mxu0 0
        %1127 = vmatpush1.bf16.msra.mxu0 0
        %1128 = vmatprep.subr.bf16.mxu0 0
        %1129 = vmatpush1.bf16.msra.mxu0 0
        %1130 = vmatprep.mubr.bf16.mxu0 0
        %1131 = vmatmul.mubr.bf16.gmra.mrb[0].mxu0 %v1087
        %v1132 = vpop.f32.mrb[0].mxu0
        %v1133 = vadd.f32 0.0, %v1132
        %v1134 = vpop.f32.mrb[0].mxu0
        %v1135 = vpop.f32.mrb[0].mxu0
        %v1136 = vadd.f32 0.0, %v1135
        %v1137 = vpop.f32.mrb[0].mxu0
        %1138 = vmatprep.mubr.bf16.mxu0 0
        %1139 = vmatmul.mubr.bf16.gmra.mrb[0].mxu0 %v1090
        %v1140 = vpop.f32.mrb[0].mxu0
        %v1141 = vadd.f32 0.0, %v1140
        %v1142 = vpop.f32.mrb[0].mxu0
        %v1143 = vpop.f32.mrb[0].mxu0
        %v1144 = vadd.f32 0.0, %v1143
        %v1145 = vpop.f32.mrb[0].mxu0
        %1146 = vmatprep.mubr.bf16.mxu0 0
        %1147 = vmatmul.mubr.bf16.gmra.mrb[0].mxu0 %v1093
        %v1148 = vpop.f32.mrb[0].mxu0
        %v1149 = vadd.f32 0.0, %v1148
        %v1150 = vpop.f32.mrb[0].mxu0
        %v1151 = vpop.f32.mrb[0].mxu0
        %v1152 = vadd.f32 0.0, %v1151
        %v1153 = vpop.f32.mrb[0].mxu0
        %1154 = vmatprep.mubr.bf16.mxu0 0
        %1155 = vmatmul.mubr.bf16.gmra.mrb[0].mxu0 %v1096
        %v1156 = vpop.f32.mrb[0].mxu0
        %v1157 = vadd.f32 0.0, %v1156
        %v1158 = vpop.f32.mrb[0].mxu0
        %v1159 = vpop.f32.mrb[0].mxu0
        %v1160 = vadd.f32 0.0, %v1159
        %v1161 = vpop.f32.mrb[0].mxu0
        %1162 = vdwg.mxu0
        %1163 = vmax.xlane.f32.xlu0 %v1133
        %v1164 = vpop.xlane.xlu0 %1163
        %1165 = vmax.xlane.f32.xlu0 %v1136
        %v1166 = vpop.xlane.xlu0 %1165
        %1167 = vmax.xlane.f32.xlu0 %v1141
        %v1168 = vpop.xlane.xlu0 %1167
        %1169 = vmax.xlane.f32.xlu0 %v1144
        %v1170 = vpop.xlane.xlu0 %1169
        %1171 = vmax.xlane.f32.xlu0 %v1149
        %v1172 = vpop.xlane.xlu0 %1171
        %1173 = vmax.xlane.f32.xlu0 %v1152
        %v1174 = vpop.xlane.xlu0 %1173
        %1175 = vmax.xlane.f32.xlu0 %v1157
        %v1176 = vpop.xlane.xlu0 %1175
        %1177 = vmax.xlane.f32.xlu0 %v1160
        %v1178 = vpop.xlane.xlu0 %1177
        %v1179 = vsub.f32 %v1133, %v1164
        %v1180 = vsub.f32 %v1136, %v1166
        %v1181 = vsub.f32 %v1141, %v1168
        %v1182 = vsub.f32 %v1144, %v1170
        %v1183 = vsub.f32 %v1149, %v1172
        %v1184 = vsub.f32 %v1152, %v1174
        %v1185 = vsub.f32 %v1157, %v1176
        %v1186 = vsub.f32 %v1160, %v1178
        %v1187 = vmul.f32 %v1179, 1.442695
        %v1188 = vpow.pop %v1187
        %v1189 = vmul.f32 %v1180, 1.442695
        %v1190 = vpow.pop %v1189
        %v1191 = vmul.f32 %v1181, 1.442695
        %v1192 = vpow.pop %v1191
        %v1193 = vmul.f32 %v1182, 1.442695
        %v1194 = vpow.pop %v1193
        %v1195 = vmul.f32 %v1183, 1.442695
        %v1196 = vpow.pop %v1195
        %v1197 = vmul.f32 %v1184, 1.442695
        %v1198 = vpow.pop %v1197
        %v1199 = vmul.f32 %v1185, 1.442695
        %v1200 = vpow.pop %v1199
        %v1201 = vmul.f32 %v1186, 1.442695
        %v1202 = vpow.pop %v1201
        %1203 = vadd.xlane.f32.xlu0 %v1188
        %v1204 = vpop.xlane.xlu0 %1203
        %1205 = vadd.xlane.f32.xlu0 %v1190
        %v1206 = vpop.xlane.xlu0 %1205
        %1207 = vadd.xlane.f32.xlu0 %v1192
        %v1208 = vpop.xlane.xlu0 %1207
        %1209 = vadd.xlane.f32.xlu0 %v1194
        %v1210 = vpop.xlane.xlu0 %1209
        %1211 = vadd.xlane.f32.xlu0 %v1196
        %v1212 = vpop.xlane.xlu0 %1211
        %1213 = vadd.xlane.f32.xlu0 %v1198
        %v1214 = vpop.xlane.xlu0 %1213
        %1215 = vadd.xlane.f32.xlu0 %v1200
        %v1216 = vpop.xlane.xlu0 %1215
        %1217 = vadd.xlane.f32.xlu0 %v1202
        %v1218 = vpop.xlane.xlu0 %1217
        %v1219 = vrcp.pop %v1204
        %v1220 = vrcp.pop %v1206
        %v1221 = vrcp.pop %v1208
        %v1222 = vrcp.pop %v1210
        %v1223 = vrcp.pop %v1212
        %v1224 = vrcp.pop %v1214
        %v1225 = vrcp.pop %v1216
        %v1226 = vrcp.pop %v1218
        %v1227 = vmul.f32 %v1188, %v1219
        %v1228 = vmul.f32 %v1190, %v1220
        %v1229 = vmul.f32 %v1192, %v1221
        %v1230 = vmul.f32 %v1194, %v1222
        %v1231 = vmul.f32 %v1196, %v1223
        %v1232 = vmul.f32 %v1198, %v1224
        %v1233 = vmul.f32 %v1200, %v1225
        %v1234 = vmul.f32 %v1202, %v1226
        %v1235 = vpack.c.bf16 %v1228, %v1227
        %v1236 = vpack.c.bf16 %v1230, %v1229
        %v1237 = vpack.c.bf16 %v1232, %v1231
        %v1238 = vpack.c.bf16 %v1234, %v1233
        %1239 = vmatprep.subr.bf16.mxu0 0
        %1240 = vmatpush1.bf16.xpose.msra.mxu0 %v1083
        %1241 = vmatprep.subr.bf16.mxu0 0
        %1242 = vmatpush1.bf16.xpose.msra.mxu0 %v1084
        %1243 = vmatprep.subr.bf16.mxu0 0
        %1244 = vmatpush1.bf16.xpose.msra.mxu0 0
        %1245 = vmatprep.subr.bf16.mxu0 0
        %1246 = vmatpush1.bf16.xpose.msra.mxu0 0
        %1247 = vmatprep.subr.bf16.mxu0 0
        %1248 = vmatpush1.bf16.xpose.msra.mxu0 0
        %1249 = vmatprep.subr.bf16.mxu0 0
        %1250 = vmatpush1.bf16.xpose.msra.mxu0 0
        %1251 = vmatprep.subr.bf16.mxu0 0
        %1252 = vmatpush1.bf16.xpose.msra.mxu0 0
        %1253 = vmatprep.subr.bf16.mxu0 0
        %1254 = vmatpush1.bf16.xpose.msra.mxu0 0
        %1255 = vmatprep.subr.bf16.mxu0 0
        %1256 = vmatpush1.bf16.xpose.msra.mxu0 0
        %1257 = vmatprep.subr.bf16.mxu0 0
        %1258 = vmatpush1.bf16.xpose.msra.mxu0 0
        %1259 = vmatprep.subr.bf16.mxu0 0
        %1260 = vmatpush1.bf16.xpose.msra.mxu0 0
        %1261 = vmatprep.subr.bf16.mxu0 0
        %1262 = vmatpush1.bf16.xpose.msra.mxu0 0
        %1263 = vmatprep.subr.bf16.mxu0 0
        %1264 = vmatpush1.bf16.xpose.msra.mxu0 0
        %1265 = vmatprep.subr.bf16.mxu0 0
        %1266 = vmatpush1.bf16.xpose.msra.mxu0 0
        %1267 = vmatprep.subr.bf16.mxu0 0
        %1268 = vmatpush1.bf16.xpose.msra.mxu0 0
        %1269 = vmatprep.subr.bf16.mxu0 0
        %1270 = vmatpush1.bf16.xpose.msra.mxu0 0
        %1271 = vmatprep.mubr.bf16.mxu0 0
        %1272 = vmatmul.mubr.bf16.gmra.mrb[0].mxu0 %v1235
        %v1273 = vpop.f32.mrb[0].mxu0
        %v1274 = vadd.f32 0.0, %v1273
        %v1275 = vpop.f32.mrb[0].mxu0
        %v1276 = vpop.f32.mrb[0].mxu0
        %v1277 = vadd.f32 0.0, %v1276
        %v1278 = vpop.f32.mrb[0].mxu0
        %1279 = vmatprep.mubr.bf16.mxu0 0
        %1280 = vmatmul.mubr.bf16.gmra.mrb[0].mxu0 %v1236
        %v1281 = vpop.f32.mrb[0].mxu0
        %v1282 = vadd.f32 0.0, %v1281
        %v1283 = vpop.f32.mrb[0].mxu0
        %v1284 = vpop.f32.mrb[0].mxu0
        %v1285 = vadd.f32 0.0, %v1284
        %v1286 = vpop.f32.mrb[0].mxu0
        %1287 = vmatprep.mubr.bf16.mxu0 0
        %1288 = vmatmul.mubr.bf16.gmra.mrb[0].mxu0 %v1237
        %v1289 = vpop.f32.mrb[0].mxu0
        %v1290 = vadd.f32 0.0, %v1289
        %v1291 = vpop.f32.mrb[0].mxu0
        %v1292 = vpop.f32.mrb[0].mxu0
        %v1293 = vadd.f32 0.0, %v1292
        %v1294 = vpop.f32.mrb[0].mxu0
        %1295 = vmatprep.mubr.bf16.mxu0 0
        %1296 = vmatmul.mubr.bf16.gmra.mrb[0].mxu0 %v1238
        %v1297 = vpop.f32.mrb[0].mxu0
        %v1298 = vadd.f32 0.0, %v1297
        %v1299 = vpop.f32.mrb[0].mxu0
        %v1300 = vpop.f32.mrb[0].mxu0
        %v1301 = vadd.f32 0.0, %v1300
        %v1302 = vpop.f32.mrb[0].mxu0
        %1303 = vdwg.mxu0
        %v1304 = vpack.c.bf16 %v1277, %v1274
        %v1305 = vpack.c.bf16 %v1285, %v1282
        %v1306 = vpack.c.bf16 %v1293, %v1290
        %v1307 = vpack.c.bf16 %v1301, %v1298
        %v1308 = vld [vmem:[#allocation2 + $0x10] sm:$0xff]
        %v1309 = vld [vmem:[#allocation2 + $0x18] sm:$0xff]
        %v1310 = vld [vmem:[#allocation2 + $0x50] sm:$0xff]
        %v1311 = vld [vmem:[#allocation2 + $0x58] sm:$0xff]
        %1316 = vrot.lane.b32.xlu0 %v1077, 96
        %v1317 = vpop.permute.xlu0 %1316
        %1318 = vrot.lane.b32.xlu0 %v1078, 96
        %v1319 = vpop.permute.xlu0 %1318
        %1320 = vrot.lane.b32.xlu0 %v1079, 96
        %v1321 = vpop.permute.xlu0 %1320
        %1322 = vrot.lane.b32.xlu0 %v1080, 96
        %v1323 = vpop.permute.xlu0 %1322
        %v1325 = vsel %vm1085, %v1317, 0
        %v1328 = vsel %vm1085, %v1319, 0
        %v1331 = vsel %vm1085, %v1321, 0
        %v1334 = vsel %vm1085, %v1323, 0
        %1336 = vmatprep.subr.bf16.mxu0 0
        %1337 = vmatpush1.bf16.msra.mxu0 %v1308
        %1338 = vmatprep.subr.bf16.mxu0 0
        %1339 = vmatpush1.bf16.msra.mxu0 %v1309
        %1340 = vmatprep.subr.bf16.mxu0 0
        %1341 = vmatpush1.bf16.msra.mxu0 0
        %1342 = vmatprep.subr.bf16.mxu0 0
        %1343 = vmatpush1.bf16.msra.mxu0 0
        %1344 = vmatprep.subr.bf16.mxu0 0
        %1345 = vmatpush1.bf16.msra.mxu0 0
        %1346 = vmatprep.subr.bf16.mxu0 0
        %1347 = vmatpush1.bf16.msra.mxu0 0
        %1348 = vmatprep.subr.bf16.mxu0 0
        %1349 = vmatpush1.bf16.msra.mxu0 0
        %1350 = vmatprep.subr.bf16.mxu0 0
        %1351 = vmatpush1.bf16.msra.mxu0 0
        %1352 = vmatprep.subr.bf16.mxu0 0
        %1353 = vmatpush1.bf16.msra.mxu0 0
        %1354 = vmatprep.subr.bf16.mxu0 0
        %1355 = vmatpush1.bf16.msra.mxu0 0
        %1356 = vmatprep.subr.bf16.mxu0 0
        %1357 = vmatpush1.bf16.msra.mxu0 0
        %1358 = vmatprep.subr.bf16.mxu0 0
        %1359 = vmatpush1.bf16.msra.mxu0 0
        %1360 = vmatprep.subr.bf16.mxu0 0
        %1361 = vmatpush1.bf16.msra.mxu0 0
        %1362 = vmatprep.subr.bf16.mxu0 0
        %1363 = vmatpush1.bf16.msra.mxu0 0
        %1364 = vmatprep.subr.bf16.mxu0 0
        %1365 = vmatpush1.bf16.msra.mxu0 0
        %1366 = vmatprep.subr.bf16.mxu0 0
        %1367 = vmatpush1.bf16.msra.mxu0 0
        %1368 = vmatprep.mubr.bf16.mxu0 0
        %1369 = vmatmul.mubr.bf16.gmra.mrb[0].mxu0 %v1325
        %v1370 = vpop.f32.mrb[0].mxu0
        %v1371 = vadd.f32 0.0, %v1370
        %v1372 = vpop.f32.mrb[0].mxu0
        %v1373 = vpop.f32.mrb[0].mxu0
        %v1374 = vadd.f32 0.0, %v1373
        %v1375 = vpop.f32.mrb[0].mxu0
        %1376 = vmatprep.mubr.bf16.mxu0 0
        %1377 = vmatmul.mubr.bf16.gmra.mrb[0].mxu0 %v1328
        %v1378 = vpop.f32.mrb[0].mxu0
        %v1379 = vadd.f32 0.0, %v1378
        %v1380 = vpop.f32.mrb[0].mxu0
        %v1381 = vpop.f32.mrb[0].mxu0
        %v1382 = vadd.f32 0.0, %v1381
        %v1383 = vpop.f32.mrb[0].mxu0
        %1384 = vmatprep.mubr.bf16.mxu0 0
        %1385 = vmatmul.mubr.bf16.gmra.mrb[0].mxu0 %v1331
        %v1386 = vpop.f32.mrb[0].mxu0
        %v1387 = vadd.f32 0.0, %v1386
        %v1388 = vpop.f32.mrb[0].mxu0
        %v1389 = vpop.f32.mrb[0].mxu0
        %v1390 = vadd.f32 0.0, %v1389
        %v1391 = vpop.f32.mrb[0].mxu0
        %1392 = vmatprep.mubr.bf16.mxu0 0
        %1393 = vmatmul.mubr.bf16.gmra.mrb[0].mxu0 %v1334
        %v1394 = vpop.f32.mrb[0].mxu0
        %v1395 = vadd.f32 0.0, %v1394
        %v1396 = vpop.f32.mrb[0].mxu0
        %v1397 = vpop.f32.mrb[0].mxu0
        %v1398 = vadd.f32 0.0, %v1397
        %v1399 = vpop.f32.mrb[0].mxu0
        %1400 = vdwg.mxu0
        %1401 = vmax.xlane.f32.xlu0 %v1371
        %v1402 = vpop.xlane.xlu0 %1401
        %1403 = vmax.xlane.f32.xlu0 %v1374
        %v1404 = vpop.xlane.xlu0 %1403
        %1405 = vmax.xlane.f32.xlu0 %v1379
        %v1406 = vpop.xlane.xlu0 %1405
        %1407 = vmax.xlane.f32.xlu0 %v1382
        %v1408 = vpop.xlane.xlu0 %1407
        %1409 = vmax.xlane.f32.xlu0 %v1387
        %v1410 = vpop.xlane.xlu0 %1409
        %1411 = vmax.xlane.f32.xlu0 %v1390
        %v1412 = vpop.xlane.xlu0 %1411
        %1413 = vmax.xlane.f32.xlu0 %v1395
        %v1414 = vpop.xlane.xlu0 %1413
        %1415 = vmax.xlane.f32.xlu0 %v1398
        %v1416 = vpop.xlane.xlu0 %1415
        %v1417 = vsub.f32 %v1371, %v1402
        %v1418 = vsub.f32 %v1374, %v1404
        %v1419 = vsub.f32 %v1379, %v1406
        %v1420 = vsub.f32 %v1382, %v1408
        %v1421 = vsub.f32 %v1387, %v1410
        %v1422 = vsub.f32 %v1390, %v1412
        %v1423 = vsub.f32 %v1395, %v1414
        %v1424 = vsub.f32 %v1398, %v1416
        %v1425 = vmul.f32 %v1417, 1.442695
        %v1426 = vpow.pop %v1425
        %v1427 = vmul.f32 %v1418, 1.442695
        %v1428 = vpow.pop %v1427
        %v1429 = vmul.f32 %v1419, 1.442695
        %v1430 = vpow.pop %v1429
        %v1431 = vmul.f32 %v1420, 1.442695
        %v1432 = vpow.pop %v1431
        %v1433 = vmul.f32 %v1421, 1.442695
        %v1434 = vpow.pop %v1433
        %v1435 = vmul.f32 %v1422, 1.442695
        %v1436 = vpow.pop %v1435
        %v1437 = vmul.f32 %v1423, 1.442695
        %v1438 = vpow.pop %v1437
        %v1439 = vmul.f32 %v1424, 1.442695
        %v1440 = vpow.pop %v1439
        %1441 = vadd.xlane.f32.xlu0 %v1426
        %v1442 = vpop.xlane.xlu0 %1441
        %1443 = vadd.xlane.f32.xlu0 %v1428
        %v1444 = vpop.xlane.xlu0 %1443
        %1445 = vadd.xlane.f32.xlu0 %v1430
        %v1446 = vpop.xlane.xlu0 %1445
        %1447 = vadd.xlane.f32.xlu0 %v1432
        %v1448 = vpop.xlane.xlu0 %1447
        %1449 = vadd.xlane.f32.xlu0 %v1434
        %v1450 = vpop.xlane.xlu0 %1449
        %1451 = vadd.xlane.f32.xlu0 %v1436
        %v1452 = vpop.xlane.xlu0 %1451
        %1453 = vadd.xlane.f32.xlu0 %v1438
        %v1454 = vpop.xlane.xlu0 %1453
        %1455 = vadd.xlane.f32.xlu0 %v1440
        %v1456 = vpop.xlane.xlu0 %1455
        %v1457 = vrcp.pop %v1442
        %v1458 = vrcp.pop %v1444
        %v1459 = vrcp.pop %v1446
        %v1460 = vrcp.pop %v1448
        %v1461 = vrcp.pop %v1450
        %v1462 = vrcp.pop %v1452
        %v1463 = vrcp.pop %v1454
        %v1464 = vrcp.pop %v1456
        %v1465 = vmul.f32 %v1426, %v1457
        %v1466 = vmul.f32 %v1428, %v1458
        %v1467 = vmul.f32 %v1430, %v1459
        %v1468 = vmul.f32 %v1432, %v1460
        %v1469 = vmul.f32 %v1434, %v1461
        %v1470 = vmul.f32 %v1436, %v1462
        %v1471 = vmul.f32 %v1438, %v1463
        %v1472 = vmul.f32 %v1440, %v1464
        %v1473 = vpack.c.bf16 %v1466, %v1465
        %v1474 = vpack.c.bf16 %v1468, %v1467
        %v1475 = vpack.c.bf16 %v1470, %v1469
        %v1476 = vpack.c.bf16 %v1472, %v1471
        %1477 = vmatprep.subr.bf16.mxu0 0
        %1478 = vmatpush1.bf16.xpose.msra.mxu0 %v1310
        %1479 = vmatprep.subr.bf16.mxu0 0
        %1480 = vmatpush1.bf16.xpose.msra.mxu0 %v1311
        %1481 = vmatprep.subr.bf16.mxu0 0
        %1482 = vmatpush1.bf16.xpose.msra.mxu0 0
        %1483 = vmatprep.subr.bf16.mxu0 0
        %1484 = vmatpush1.bf16.xpose.msra.mxu0 0
        %1485 = vmatprep.subr.bf16.mxu0 0
        %1486 = vmatpush1.bf16.xpose.msra.mxu0 0
        %1487 = vmatprep.subr.bf16.mxu0 0
        %1488 = vmatpush1.bf16.xpose.msra.mxu0 0
        %1489 = vmatprep.subr.bf16.mxu0 0
        %1490 = vmatpush1.bf16.xpose.msra.mxu0 0
        %1491 = vmatprep.subr.bf16.mxu0 0
        %1492 = vmatpush1.bf16.xpose.msra.mxu0 0
        %1493 = vmatprep.subr.bf16.mxu0 0
        %1494 = vmatpush1.bf16.xpose.msra.mxu0 0
        %1495 = vmatprep.subr.bf16.mxu0 0
        %1496 = vmatpush1.bf16.xpose.msra.mxu0 0
        %1497 = vmatprep.subr.bf16.mxu0 0
        %1498 = vmatpush1.bf16.xpose.msra.mxu0 0
        %1499 = vmatprep.subr.bf16.mxu0 0
        %1500 = vmatpush1.bf16.xpose.msra.mxu0 0
        %1501 = vmatprep.subr.bf16.mxu0 0
        %1502 = vmatpush1.bf16.xpose.msra.mxu0 0
        %1503 = vmatprep.subr.bf16.mxu0 0
        %1504 = vmatpush1.bf16.xpose.msra.mxu0 0
        %1505 = vmatprep.subr.bf16.mxu0 0
        %1506 = vmatpush1.bf16.xpose.msra.mxu0 0
        %1507 = vmatprep.subr.bf16.mxu0 0
        %1508 = vmatpush1.bf16.xpose.msra.mxu0 0
        %1509 = vmatprep.mubr.bf16.mxu0 0
        %1510 = vmatmul.mubr.bf16.gmra.mrb[0].mxu0 %v1473
        %v1511 = vpop.f32.mrb[0].mxu0
        %v1512 = vadd.f32 0.0, %v1511
        %v1513 = vpop.f32.mrb[0].mxu0
        %v1514 = vpop.f32.mrb[0].mxu0
        %v1515 = vadd.f32 0.0, %v1514
        %v1516 = vpop.f32.mrb[0].mxu0
        %1517 = vmatprep.mubr.bf16.mxu0 0
        %1518 = vmatmul.mubr.bf16.gmra.mrb[0].mxu0 %v1474
        %v1519 = vpop.f32.mrb[0].mxu0
        %v1520 = vadd.f32 0.0, %v1519
        %v1521 = vpop.f32.mrb[0].mxu0
        %v1522 = vpop.f32.mrb[0].mxu0
        %v1523 = vadd.f32 0.0, %v1522
        %v1524 = vpop.f32.mrb[0].mxu0
        %1525 = vmatprep.mubr.bf16.mxu0 0
        %1526 = vmatmul.mubr.bf16.gmra.mrb[0].mxu0 %v1475
        %v1527 = vpop.f32.mrb[0].mxu0
        %v1528 = vadd.f32 0.0, %v1527
        %v1529 = vpop.f32.mrb[0].mxu0
        %v1530 = vpop.f32.mrb[0].mxu0
        %v1531 = vadd.f32 0.0, %v1530
        %v1532 = vpop.f32.mrb[0].mxu0
        %1533 = vmatprep.mubr.bf16.mxu0 0
        %1534 = vmatmul.mubr.bf16.gmra.mrb[0].mxu0 %v1476
        %v1535 = vpop.f32.mrb[0].mxu0
        %v1536 = vadd.f32 0.0, %v1535
        %v1537 = vpop.f32.mrb[0].mxu0
        %v1538 = vpop.f32.mrb[0].mxu0
        %v1539 = vadd.f32 0.0, %v1538
        %v1540 = vpop.f32.mrb[0].mxu0
        %1541 = vdwg.mxu0
        %v1542 = vpack.c.bf16 %v1515, %v1512
        %v1543 = vpack.c.bf16 %v1523, %v1520
        %v1544 = vpack.c.bf16 %v1531, %v1528
        %v1545 = vpack.c.bf16 %v1539, %v1536
        %v1546 = vld [vmem:[#allocation2 + $0x20] sm:$0xff]
        %v1547 = vld [vmem:[#allocation2 + $0x28] sm:$0xff]
        %v1548 = vld [vmem:[#allocation2 + $0x60] sm:$0xff]
        %v1549 = vld [vmem:[#allocation2 + $0x68] sm:$0xff]
        %1550 = vrot.lane.b32.xlu0 %v1077, 64
        %v1551 = vpop.permute.xlu0 %1550
        %1552 = vrot.lane.b32.xlu0 %v1078, 64
        %v1553 = vpop.permute.xlu0 %1552
        %1554 = vrot.lane.b32.xlu0 %v1079, 64
        %v1555 = vpop.permute.xlu0 %1554
        %1556 = vrot.lane.b32.xlu0 %v1080, 64
        %v1557 = vpop.permute.xlu0 %1556
        %v1559 = vsel %vm1085, %v1551, 0
        %v1562 = vsel %vm1085, %v1553, 0
        %v1565 = vsel %vm1085, %v1555, 0
        %v1568 = vsel %vm1085, %v1557, 0
        %1570 = vmatprep.subr.bf16.mxu0 0
        %1571 = vmatpush1.bf16.msra.mxu0 %v1546
        %1572 = vmatprep.subr.bf16.mxu0 0
        %1573 = vmatpush1.bf16.msra.mxu0 %v1547
        %1574 = vmatprep.subr.bf16.mxu0 0
        %1575 = vmatpush1.bf16.msra.mxu0 0
        %1576 = vmatprep.subr.bf16.mxu0 0
        %1577 = vmatpush1.bf16.msra.mxu0 0
        %1578 = vmatprep.subr.bf16.mxu0 0
        %1579 = vmatpush1.bf16.msra.mxu0 0
        %1580 = vmatprep.subr.bf16.mxu0 0
        %1581 = vmatpush1.bf16.msra.mxu0 0
        %1582 = vmatprep.subr.bf16.mxu0 0
        %1583 = vmatpush1.bf16.msra.mxu0 0
        %1584 = vmatprep.subr.bf16.mxu0 0
        %1585 = vmatpush1.bf16.msra.mxu0 0
        %1586 = vmatprep.subr.bf16.mxu0 0
        %1587 = vmatpush1.bf16.msra.mxu0 0
        %1588 = vmatprep.subr.bf16.mxu0 0
        %1589 = vmatpush1.bf16.msra.mxu0 0
        %1590 = vmatprep.subr.bf16.mxu0 0
        %1591 = vmatpush1.bf16.msra.mxu0 0
        %1592 = vmatprep.subr.bf16.mxu0 0
        %1593 = vmatpush1.bf16.msra.mxu0 0
        %1594 = vmatprep.subr.bf16.mxu0 0
        %1595 = vmatpush1.bf16.msra.mxu0 0
        %1596 = vmatprep.subr.bf16.mxu0 0
        %1597 = vmatpush1.bf16.msra.mxu0 0
        %1598 = vmatprep.subr.bf16.mxu0 0
        %1599 = vmatpush1.bf16.msra.mxu0 0
        %1600 = vmatprep.subr.bf16.mxu0 0
        %1601 = vmatpush1.bf16.msra.mxu0 0
        %1602 = vmatprep.mubr.bf16.mxu0 0
        %1603 = vmatmul.mubr.bf16.gmra.mrb[0].mxu0 %v1559
        %v1604 = vpop.f32.mrb[0].mxu0
        %v1605 = vadd.f32 0.0, %v1604
        %v1606 = vpop.f32.mrb[0].mxu0
        %v1607 = vpop.f32.mrb[0].mxu0
        %v1608 = vadd.f32 0.0, %v1607
        %v1609 = vpop.f32.mrb[0].mxu0
        %1610 = vmatprep.mubr.bf16.mxu0 0
        %1611 = vmatmul.mubr.bf16.gmra.mrb[0].mxu0 %v1562
        %v1612 = vpop.f32.mrb[0].mxu0
        %v1613 = vadd.f32 0.0, %v1612
        %v1614 = vpop.f32.mrb[0].mxu0
        %v1615 = vpop.f32.mrb[0].mxu0
        %v1616 = vadd.f32 0.0, %v1615
        %v1617 = vpop.f32.mrb[0].mxu0
        %1618 = vmatprep.mubr.bf16.mxu0 0
        %1619 = vmatmul.mubr.bf16.gmra.mrb[0].mxu0 %v1565
        %v1620 = vpop.f32.mrb[0].mxu0
        %v1621 = vadd.f32 0.0, %v1620
        %v1622 = vpop.f32.mrb[0].mxu0
        %v1623 = vpop.f32.mrb[0].mxu0
        %v1624 = vadd.f32 0.0, %v1623
        %v1625 = vpop.f32.mrb[0].mxu0
        %1626 = vmatprep.mubr.bf16.mxu0 0
        %1627 = vmatmul.mubr.bf16.gmra.mrb[0].mxu0 %v1568
        %v1628 = vpop.f32.mrb[0].mxu0
        %v1629 = vadd.f32 0.0, %v1628
        %v1630 = vpop.f32.mrb[0].mxu0
        %v1631 = vpop.f32.mrb[0].mxu0
        %v1632 = vadd.f32 0.0, %v1631
        %v1633 = vpop.f32.mrb[0].mxu0
        %1634 = vdwg.mxu0
        %1635 = vmax.xlane.f32.xlu0 %v1605
        %v1636 = vpop.xlane.xlu0 %1635
        %1637 = vmax.xlane.f32.xlu0 %v1608
        %v1638 = vpop.xlane.xlu0 %1637
        %1639 = vmax.xlane.f32.xlu0 %v1613
        %v1640 = vpop.xlane.xlu0 %1639
        %1641 = vmax.xlane.f32.xlu0 %v1616
        %v1642 = vpop.xlane.xlu0 %1641
        %1643 = vmax.xlane.f32.xlu0 %v1621
        %v1644 = vpop.xlane.xlu0 %1643
        %1645 = vmax.xlane.f32.xlu0 %v1624
        %v1646 = vpop.xlane.xlu0 %1645
        %1647 = vmax.xlane.f32.xlu0 %v1629
        %v1648 = vpop.xlane.xlu0 %1647
        %1649 = vmax.xlane.f32.xlu0 %v1632
        %v1650 = vpop.xlane.xlu0 %1649
        %v1651 = vsub.f32 %v1605, %v1636
        %v1652 = vsub.f32 %v1608, %v1638
        %v1653 = vsub.f32 %v1613, %v1640
        %v1654 = vsub.f32 %v1616, %v1642
        %v1655 = vsub.f32 %v1621, %v1644
        %v1656 = vsub.f32 %v1624, %v1646
        %v1657 = vsub.f32 %v1629, %v1648
        %v1658 = vsub.f32 %v1632, %v1650
        %v1659 = vmul.f32 %v1651, 1.442695
        %v1660 = vpow.pop %v1659
        %v1661 = vmul.f32 %v1652, 1.442695
        %v1662 = vpow.pop %v1661
        %v1663 = vmul.f32 %v1653, 1.442695
        %v1664 = vpow.pop %v1663
        %v1665 = vmul.f32 %v1654, 1.442695
        %v1666 = vpow.pop %v1665
        %v1667 = vmul.f32 %v1655, 1.442695
        %v1668 = vpow.pop %v1667
        %v1669 = vmul.f32 %v1656, 1.442695
        %v1670 = vpow.pop %v1669
        %v1671 = vmul.f32 %v1657, 1.442695
        %v1672 = vpow.pop %v1671
        %v1673 = vmul.f32 %v1658, 1.442695
        %v1674 = vpow.pop %v1673
        %1675 = vadd.xlane.f32.xlu0 %v1660
        %v1676 = vpop.xlane.xlu0 %1675
        %1677 = vadd.xlane.f32.xlu0 %v1662
        %v1678 = vpop.xlane.xlu0 %1677
        %1679 = vadd.xlane.f32.xlu0 %v1664
        %v1680 = vpop.xlane.xlu0 %1679
        %1681 = vadd.xlane.f32.xlu0 %v1666
        %v1682 = vpop.xlane.xlu0 %1681
        %1683 = vadd.xlane.f32.xlu0 %v1668
        %v1684 = vpop.xlane.xlu0 %1683
        %1685 = vadd.xlane.f32.xlu0 %v1670
        %v1686 = vpop.xlane.xlu0 %1685
        %1687 = vadd.xlane.f32.xlu0 %v1672
        %v1688 = vpop.xlane.xlu0 %1687
        %1689 = vadd.xlane.f32.xlu0 %v1674
        %v1690 = vpop.xlane.xlu0 %1689
        %v1691 = vrcp.pop %v1676
        %v1692 = vrcp.pop %v1678
        %v1693 = vrcp.pop %v1680
        %v1694 = vrcp.pop %v1682
        %v1695 = vrcp.pop %v1684
        %v1696 = vrcp.pop %v1686
        %v1697 = vrcp.pop %v1688
        %v1698 = vrcp.pop %v1690
        %v1699 = vmul.f32 %v1660, %v1691
        %v1700 = vmul.f32 %v1662, %v1692
        %v1701 = vmul.f32 %v1664, %v1693
        %v1702 = vmul.f32 %v1666, %v1694
        %v1703 = vmul.f32 %v1668, %v1695
        %v1704 = vmul.f32 %v1670, %v1696
        %v1705 = vmul.f32 %v1672, %v1697
        %v1706 = vmul.f32 %v1674, %v1698
        %v1707 = vpack.c.bf16 %v1700, %v1699
        %v1708 = vpack.c.bf16 %v1702, %v1701
        %v1709 = vpack.c.bf16 %v1704, %v1703
        %v1710 = vpack.c.bf16 %v1706, %v1705
        %1711 = vmatprep.subr.bf16.mxu0 0
        %1712 = vmatpush1.bf16.xpose.msra.mxu0 %v1548
        %1713 = vmatprep.subr.bf16.mxu0 0
        %1714 = vmatpush1.bf16.xpose.msra.mxu0 %v1549
        %1715 = vmatprep.subr.bf16.mxu0 0
        %1716 = vmatpush1.bf16.xpose.msra.mxu0 0
        %1717 = vmatprep.subr.bf16.mxu0 0
        %1718 = vmatpush1.bf16.xpose.msra.mxu0 0
        %1719 = vmatprep.subr.bf16.mxu0 0
        %1720 = vmatpush1.bf16.xpose.msra.mxu0 0
        %1721 = vmatprep.subr.bf16.mxu0 0
        %1722 = vmatpush1.bf16.xpose.msra.mxu0 0
        %1723 = vmatprep.subr.bf16.mxu0 0
        %1724 = vmatpush1.bf16.xpose.msra.mxu0 0
        %1725 = vmatprep.subr.bf16.mxu0 0
        %1726 = vmatpush1.bf16.xpose.msra.mxu0 0
        %1727 = vmatprep.subr.bf16.mxu0 0
        %1728 = vmatpush1.bf16.xpose.msra.mxu0 0
        %1729 = vmatprep.subr.bf16.mxu0 0
        %1730 = vmatpush1.bf16.xpose.msra.mxu0 0
        %1731 = vmatprep.subr.bf16.mxu0 0
        %1732 = vmatpush1.bf16.xpose.msra.mxu0 0
        %1733 = vmatprep.subr.bf16.mxu0 0
        %1734 = vmatpush1.bf16.xpose.msra.mxu0 0
        %1735 = vmatprep.subr.bf16.mxu0 0
        %1736 = vmatpush1.bf16.xpose.msra.mxu0 0
        %1737 = vmatprep.subr.bf16.mxu0 0
        %1738 = vmatpush1.bf16.xpose.msra.mxu0 0
        %1739 = vmatprep.subr.bf16.mxu0 0
        %1740 = vmatpush1.bf16.xpose.msra.mxu0 0
        %1741 = vmatprep.subr.bf16.mxu0 0
        %1742 = vmatpush1.bf16.xpose.msra.mxu0 0
        %1743 = vmatprep.mubr.bf16.mxu0 0
        %1744 = vmatmul.mubr.bf16.gmra.mrb[0].mxu0 %v1707
        %v1745 = vpop.f32.mrb[0].mxu0
        %v1746 = vadd.f32 0.0, %v1745
        %v1747 = vpop.f32.mrb[0].mxu0
        %v1748 = vpop.f32.mrb[0].mxu0
        %v1749 = vadd.f32 0.0, %v1748
        %v1750 = vpop.f32.mrb[0].mxu0
        %1751 = vmatprep.mubr.bf16.mxu0 0
        %1752 = vmatmul.mubr.bf16.gmra.mrb[0].mxu0 %v1708
        %v1753 = vpop.f32.mrb[0].mxu0
        %v1754 = vadd.f32 0.0, %v1753
        %v1755 = vpop.f32.mrb[0].mxu0
        %v1756 = vpop.f32.mrb[0].mxu0
        %v1757 = vadd.f32 0.0, %v1756
        %v1758 = vpop.f32.mrb[0].mxu0
        %1759 = vmatprep.mubr.bf16.mxu0 0
        %1760 = vmatmul.mubr.bf16.gmra.mrb[0].mxu0 %v1709
        %v1761 = vpop.f32.mrb[0].mxu0
        %v1762 = vadd.f32 0.0, %v1761
        %v1763 = vpop.f32.mrb[0].mxu0
        %v1764 = vpop.f32.mrb[0].mxu0
        %v1765 = vadd.f32 0.0, %v1764
        %v1766 = vpop.f32.mrb[0].mxu0
        %1767 = vmatprep.mubr.bf16.mxu0 0
        %1768 = vmatmul.mubr.bf16.gmra.mrb[0].mxu0 %v1710
        %v1769 = vpop.f32.mrb[0].mxu0
        %v1770 = vadd.f32 0.0, %v1769
        %v1771 = vpop.f32.mrb[0].mxu0
        %v1772 = vpop.f32.mrb[0].mxu0
        %v1773 = vadd.f32 0.0, %v1772
        %v1774 = vpop.f32.mrb[0].mxu0
        %1775 = vdwg.mxu0
        %v1776 = vpack.c.bf16 %v1749, %v1746
        %v1777 = vpack.c.bf16 %v1757, %v1754
        %v1778 = vpack.c.bf16 %v1765, %v1762
        %v1779 = vpack.c.bf16 %v1773, %v1770
        %v1780 = vld [vmem:[#allocation2 + $0x30] sm:$0xff]
        %v1781 = vld [vmem:[#allocation2 + $0x38] sm:$0xff]
        %v1782 = vld [vmem:[#allocation2 + $0x70] sm:$0xff]
        %v1783 = vld [vmem:[#allocation2 + $0x78] sm:$0xff]
        %1784 = vrot.lane.b32.xlu0 %v1077, 32
        %v1785 = vpop.permute.xlu0 %1784
        %1786 = vrot.lane.b32.xlu0 %v1078, 32
        %v1787 = vpop.permute.xlu0 %1786
        %1788 = vrot.lane.b32.xlu0 %v1079, 32
        %v1789 = vpop.permute.xlu0 %1788
        %1790 = vrot.lane.b32.xlu0 %v1080, 32
        %v1791 = vpop.permute.xlu0 %1790
        %v1793 = vsel %vm1085, %v1785, 0
        %v1796 = vsel %vm1085, %v1787, 0
        %v1799 = vsel %vm1085, %v1789, 0
        %v1802 = vsel %vm1085, %v1791, 0
        %1804 = vmatprep.subr.bf16.mxu0 0
        %1805 = vmatpush1.bf16.msra.mxu0 %v1780
        %1806 = vmatprep.subr.bf16.mxu0 0
        %1807 = vmatpush1.bf16.msra.mxu0 %v1781
        %1808 = vmatprep.subr.bf16.mxu0 0
        %1809 = vmatpush1.bf16.msra.mxu0 0
        %1810 = vmatprep.subr.bf16.mxu0 0
        %1811 = vmatpush1.bf16.msra.mxu0 0
        %1812 = vmatprep.subr.bf16.mxu0 0
        %1813 = vmatpush1.bf16.msra.mxu0 0
        %1814 = vmatprep.subr.bf16.mxu0 0
        %1815 = vmatpush1.bf16.msra.mxu0 0
        %1816 = vmatprep.subr.bf16.mxu0 0
        %1817 = vmatpush1.bf16.msra.mxu0 0
        %1818 = vmatprep.subr.bf16.mxu0 0
        %1819 = vmatpush1.bf16.msra.mxu0 0
        %1820 = vmatprep.subr.bf16.mxu0 0
        %1821 = vmatpush1.bf16.msra.mxu0 0
        %1822 = vmatprep.subr.bf16.mxu0 0
        %1823 = vmatpush1.bf16.msra.mxu0 0
        %1824 = vmatprep.subr.bf16.mxu0 0
        %1825 = vmatpush1.bf16.msra.mxu0 0
        %1826 = vmatprep.subr.bf16.mxu0 0
        %1827 = vmatpush1.bf16.msra.mxu0 0
        %1828 = vmatprep.subr.bf16.mxu0 0
        %1829 = vmatpush1.bf16.msra.mxu0 0
        %1830 = vmatprep.subr.bf16.mxu0 0
        %1831 = vmatpush1.bf16.msra.mxu0 0
        %1832 = vmatprep.subr.bf16.mxu0 0
        %1833 = vmatpush1.bf16.msra.mxu0 0
        %1834 = vmatprep.subr.bf16.mxu0 0
        %1835 = vmatpush1.bf16.msra.mxu0 0
        %1836 = vmatprep.mubr.bf16.mxu0 0
        %1837 = vmatmul.mubr.bf16.gmra.mrb[0].mxu0 %v1793
        %v1838 = vpop.f32.mrb[0].mxu0
        %v1839 = vadd.f32 0.0, %v1838
        %v1840 = vpop.f32.mrb[0].mxu0
        %v1841 = vpop.f32.mrb[0].mxu0
        %v1842 = vadd.f32 0.0, %v1841
        %v1843 = vpop.f32.mrb[0].mxu0
        %1844 = vmatprep.mubr.bf16.mxu0 0
        %1845 = vmatmul.mubr.bf16.gmra.mrb[0].mxu0 %v1796
        %v1846 = vpop.f32.mrb[0].mxu0
        %v1847 = vadd.f32 0.0, %v1846
        %v1848 = vpop.f32.mrb[0].mxu0
        %v1849 = vpop.f32.mrb[0].mxu0
        %v1850 = vadd.f32 0.0, %v1849
        %v1851 = vpop.f32.mrb[0].mxu0
        %1852 = vmatprep.mubr.bf16.mxu0 0
        %1853 = vmatmul.mubr.bf16.gmra.mrb[0].mxu0 %v1799
        %v1854 = vpop.f32.mrb[0].mxu0
        %v1855 = vadd.f32 0.0, %v1854
        %v1856 = vpop.f32.mrb[0].mxu0
        %v1857 = vpop.f32.mrb[0].mxu0
        %v1858 = vadd.f32 0.0, %v1857
        %v1859 = vpop.f32.mrb[0].mxu0
        %1860 = vmatprep.mubr.bf16.mxu0 0
        %1861 = vmatmul.mubr.bf16.gmra.mrb[0].mxu0 %v1802
        %v1862 = vpop.f32.mrb[0].mxu0
        %v1863 = vadd.f32 0.0, %v1862
        %v1864 = vpop.f32.mrb[0].mxu0
        %v1865 = vpop.f32.mrb[0].mxu0
        %v1866 = vadd.f32 0.0, %v1865
        %v1867 = vpop.f32.mrb[0].mxu0
        %1868 = vdwg.mxu0
        %1869 = vmax.xlane.f32.xlu0 %v1839
        %v1870 = vpop.xlane.xlu0 %1869
        %1871 = vmax.xlane.f32.xlu0 %v1842
        %v1872 = vpop.xlane.xlu0 %1871
        %1873 = vmax.xlane.f32.xlu0 %v1847
        %v1874 = vpop.xlane.xlu0 %1873
        %1875 = vmax.xlane.f32.xlu0 %v1850
        %v1876 = vpop.xlane.xlu0 %1875
        %1877 = vmax.xlane.f32.xlu0 %v1855
        %v1878 = vpop.xlane.xlu0 %1877
        %1879 = vmax.xlane.f32.xlu0 %v1858
        %v1880 = vpop.xlane.xlu0 %1879
        %1881 = vmax.xlane.f32.xlu0 %v1863
        %v1882 = vpop.xlane.xlu0 %1881
        %1883 = vmax.xlane.f32.xlu0 %v1866
        %v1884 = vpop.xlane.xlu0 %1883
        %v1885 = vsub.f32 %v1839, %v1870
        %v1886 = vsub.f32 %v1842, %v1872
        %v1887 = vsub.f32 %v1847, %v1874
        %v1888 = vsub.f32 %v1850, %v1876
        %v1889 = vsub.f32 %v1855, %v1878
        %v1890 = vsub.f32 %v1858, %v1880
        %v1891 = vsub.f32 %v1863, %v1882
        %v1892 = vsub.f32 %v1866, %v1884
        %v1893 = vmul.f32 %v1885, 1.442695
        %v1894 = vpow.pop %v1893
        %v1895 = vmul.f32 %v1886, 1.442695
        %v1896 = vpow.pop %v1895
        %v1897 = vmul.f32 %v1887, 1.442695
        %v1898 = vpow.pop %v1897
        %v1899 = vmul.f32 %v1888, 1.442695
        %v1900 = vpow.pop %v1899
        %v1901 = vmul.f32 %v1889, 1.442695
        %v1902 = vpow.pop %v1901
        %v1903 = vmul.f32 %v1890, 1.442695
        %v1904 = vpow.pop %v1903
        %v1905 = vmul.f32 %v1891, 1.442695
        %v1906 = vpow.pop %v1905
        %v1907 = vmul.f32 %v1892, 1.442695
        %v1908 = vpow.pop %v1907
        %1909 = vadd.xlane.f32.xlu0 %v1894
        %v1910 = vpop.xlane.xlu0 %1909
        %1911 = vadd.xlane.f32.xlu0 %v1896
        %v1912 = vpop.xlane.xlu0 %1911
        %1913 = vadd.xlane.f32.xlu0 %v1898
        %v1914 = vpop.xlane.xlu0 %1913
        %1915 = vadd.xlane.f32.xlu0 %v1900
        %v1916 = vpop.xlane.xlu0 %1915
        %1917 = vadd.xlane.f32.xlu0 %v1902
        %v1918 = vpop.xlane.xlu0 %1917
        %1919 = vadd.xlane.f32.xlu0 %v1904
        %v1920 = vpop.xlane.xlu0 %1919
        %1921 = vadd.xlane.f32.xlu0 %v1906
        %v1922 = vpop.xlane.xlu0 %1921
        %1923 = vadd.xlane.f32.xlu0 %v1908
        %v1924 = vpop.xlane.xlu0 %1923
        %v1925 = vrcp.pop %v1910
        %v1926 = vrcp.pop %v1912
        %v1927 = vrcp.pop %v1914
        %v1928 = vrcp.pop %v1916
        %v1929 = vrcp.pop %v1918
        %v1930 = vrcp.pop %v1920
        %v1931 = vrcp.pop %v1922
        %v1932 = vrcp.pop %v1924
        %v1933 = vmul.f32 %v1894, %v1925
        %v1934 = vmul.f32 %v1896, %v1926
        %v1935 = vmul.f32 %v1898, %v1927
        %v1936 = vmul.f32 %v1900, %v1928
        %v1937 = vmul.f32 %v1902, %v1929
        %v1938 = vmul.f32 %v1904, %v1930
        %v1939 = vmul.f32 %v1906, %v1931
        %v1940 = vmul.f32 %v1908, %v1932
        %v1941 = vpack.c.bf16 %v1934, %v1933
        %v1942 = vpack.c.bf16 %v1936, %v1935
        %v1943 = vpack.c.bf16 %v1938, %v1937
        %v1944 = vpack.c.bf16 %v1940, %v1939
        %1945 = vmatprep.subr.bf16.mxu0 0
        %1946 = vmatpush1.bf16.xpose.msra.mxu0 %v1782
        %1947 = vmatprep.subr.bf16.mxu0 0
        %1948 = vmatpush1.bf16.xpose.msra.mxu0 %v1783
        %1949 = vmatprep.subr.bf16.mxu0 0
        %1950 = vmatpush1.bf16.xpose.msra.mxu0 0
        %1951 = vmatprep.subr.bf16.mxu0 0
        %1952 = vmatpush1.bf16.xpose.msra.mxu0 0
        %1953 = vmatprep.subr.bf16.mxu0 0
        %1954 = vmatpush1.bf16.xpose.msra.mxu0 0
        %1955 = vmatprep.subr.bf16.mxu0 0
        %1956 = vmatpush1.bf16.xpose.msra.mxu0 0
        %1957 = vmatprep.subr.bf16.mxu0 0
        %1958 = vmatpush1.bf16.xpose.msra.mxu0 0
        %1959 = vmatprep.subr.bf16.mxu0 0
        %1960 = vmatpush1.bf16.xpose.msra.mxu0 0
        %1961 = vmatprep.subr.bf16.mxu0 0
        %1962 = vmatpush1.bf16.xpose.msra.mxu0 0
        %1963 = vmatprep.subr.bf16.mxu0 0
        %1964 = vmatpush1.bf16.xpose.msra.mxu0 0
        %1965 = vmatprep.subr.bf16.mxu0 0
        %1966 = vmatpush1.bf16.xpose.msra.mxu0 0
        %1967 = vmatprep.subr.bf16.mxu0 0
        %1968 = vmatpush1.bf16.xpose.msra.mxu0 0
        %1969 = vmatprep.subr.bf16.mxu0 0
        %1970 = vmatpush1.bf16.xpose.msra.mxu0 0
        %1971 = vmatprep.subr.bf16.mxu0 0
        %1972 = vmatpush1.bf16.xpose.msra.mxu0 0
        %1973 = vmatprep.subr.bf16.mxu0 0
        %1974 = vmatpush1.bf16.xpose.msra.mxu0 0
        %1975 = vmatprep.subr.bf16.mxu0 0
        %1976 = vmatpush1.bf16.xpose.msra.mxu0 0
        %1977 = vmatprep.mubr.bf16.mxu0 0
        %1978 = vmatmul.mubr.bf16.gmra.mrb[0].mxu0 %v1941
        %v1979 = vpop.f32.mrb[0].mxu0
        %v1980 = vadd.f32 0.0, %v1979
        %v1981 = vpop.f32.mrb[0].mxu0
        %v1982 = vpop.f32.mrb[0].mxu0
        %v1983 = vadd.f32 0.0, %v1982
        %v1984 = vpop.f32.mrb[0].mxu0
        %1985 = vmatprep.mubr.bf16.mxu0 0
        %1986 = vmatmul.mubr.bf16.gmra.mrb[0].mxu0 %v1942
        %v1987 = vpop.f32.mrb[0].mxu0
        %v1988 = vadd.f32 0.0, %v1987
        %v1989 = vpop.f32.mrb[0].mxu0
        %v1990 = vpop.f32.mrb[0].mxu0
        %v1991 = vadd.f32 0.0, %v1990
        %v1992 = vpop.f32.mrb[0].mxu0
        %1993 = vmatprep.mubr.bf16.mxu0 0
        %1994 = vmatmul.mubr.bf16.gmra.mrb[0].mxu0 %v1943
        %v1995 = vpop.f32.mrb[0].mxu0
        %v1996 = vadd.f32 0.0, %v1995
        %v1997 = vpop.f32.mrb[0].mxu0
        %v1998 = vpop.f32.mrb[0].mxu0
        %v1999 = vadd.f32 0.0, %v1998
        %v2000 = vpop.f32.mrb[0].mxu0
        %2001 = vmatprep.mubr.bf16.mxu0 0
        %2002 = vmatmul.mubr.bf16.gmra.mrb[0].mxu0 %v1944
        %v2003 = vpop.f32.mrb[0].mxu0
        %v2004 = vadd.f32 0.0, %v2003
        %v2005 = vpop.f32.mrb[0].mxu0
        %v2006 = vpop.f32.mrb[0].mxu0
        %v2007 = vadd.f32 0.0, %v2006
        %v2008 = vpop.f32.mrb[0].mxu0
        %2009 = vdwg.mxu0
        %v2010 = vpack.c.bf16 %v1983, %v1980
        %v2011 = vpack.c.bf16 %v1991, %v1988
        %v2012 = vpack.c.bf16 %v1999, %v1996
        %v2013 = vpack.c.bf16 %v2007, %v2004
        %2018 = vrot.lane.b32.xlu0 %v1542, 32
        %v2019 = vpop.permute.xlu0 %2018
        %2020 = vrot.lane.b32.xlu0 %v1543, 32
        %v2021 = vpop.permute.xlu0 %2020
        %2022 = vrot.lane.b32.xlu0 %v1544, 32
        %v2023 = vpop.permute.xlu0 %2022
        %2024 = vrot.lane.b32.xlu0 %v1545, 32
        %v2025 = vpop.permute.xlu0 %2024
        %2030 = vrot.lane.b32.xlu0 %v1776, 64
        %v2031 = vpop.permute.xlu0 %2030
        %2032 = vrot.lane.b32.xlu0 %v1777, 64
        %v2033 = vpop.permute.xlu0 %2032
        %2034 = vrot.lane.b32.xlu0 %v1778, 64
        %v2035 = vpop.permute.xlu0 %2034
        %2036 = vrot.lane.b32.xlu0 %v1779, 64
        %v2037 = vpop.permute.xlu0 %2036
        %2042 = vrot.lane.b32.xlu0 %v2010, 96
        %v2043 = vpop.permute.xlu0 %2042
        %2044 = vrot.lane.b32.xlu0 %v2011, 96
        %v2045 = vpop.permute.xlu0 %2044
        %2046 = vrot.lane.b32.xlu0 %v2012, 96
        %v2047 = vpop.permute.xlu0 %2046
        %2048 = vrot.lane.b32.xlu0 %v2013, 96
        %v2049 = vpop.permute.xlu0 %2048
        %v2052 = vsel %vm1085, %v1304, %v2019
        %v2055 = vsel %vm1085, %v1305, %v2021
        %v2058 = vsel %vm1085, %v1306, %v2023
        %v2061 = vsel %vm1085, %v1307, %v2025
        %vm2062 = vcmask 523264
        %v2064 = vsel %vm2062, %v2052, %v2031
        %v2066 = vsel %vm2062, %v2055, %v2033
        %v2068 = vsel %vm2062, %v2058, %v2035
        %v2070 = vsel %vm2062, %v2061, %v2037
        %vm2071 = vcmask 785408
        %v2073 = vsel %vm2071, %v2064, %v2043
        %v2076 = vsel %vm2071, %v2066, %v2045
        %v2079 = vsel %vm2071, %v2068, %v2047
        %v2082 = vsel %vm2071, %v2070, %v2049
        %v2084 = vld [vmem:[#allocation6] sm:$0xf]
        %v2085 = vld [vmem:[#allocation6 + $0x4] sm:$0xf]
        %v2086 = vld [vmem:[#allocation6 + $0x8] sm:$0xf]
        %v2087 = vld [vmem:[#allocation6 + $0xc] sm:$0xf]
        %v2088 = vld [vmem:[#allocation6 + $0x10] sm:$0xf]
        %v2089 = vld [vmem:[#allocation6 + $0x14] sm:$0xf]
        %v2090 = vld [vmem:[#allocation6 + $0x18] sm:$0xf]
        %v2091 = vld [vmem:[#allocation6 + $0x1c] sm:$0xf]
        %v2092 = vld [vmem:[#allocation6 + $0x20] sm:$0xf]
        %v2093 = vld [vmem:[#allocation6 + $0x24] sm:$0xf]
        %v2094 = vld [vmem:[#allocation6 + $0x28] sm:$0xf]
        %v2095 = vld [vmem:[#allocation6 + $0x2c] sm:$0xf]
        %v2096 = vld [vmem:[#allocation6 + $0x30] sm:$0xf]
        %v2097 = vld [vmem:[#allocation6 + $0x34] sm:$0xf]
        %v2098 = vld [vmem:[#allocation6 + $0x38] sm:$0xf]
        %v2099 = vld [vmem:[#allocation6 + $0x3c] sm:$0xf]
        %v2100 = vld [vmem:[%s6] sm:$0x1]
        %v2102 = vlaneseq
        %v2103 = vshrl.u32 %v2102, 7
        %v2104 = vsub.s32 0, %v2103
        %v2105 = vrot.slane %v2100, %v2104
        %v2123 = vunpack.c.l.b16 %v2084
        %v2124 = vunpack.c.l.b16 %v2085
        %v2125 = vunpack.c.l.b16 %v2086
        %v2126 = vunpack.c.l.b16 %v2087
        %v2127 = vunpack.c.l.b16 %v2088
        %v2128 = vunpack.c.l.b16 %v2089
        %v2129 = vunpack.c.l.b16 %v2090
        %v2130 = vunpack.c.l.b16 %v2091
        %v2131 = vunpack.c.l.b16 %v2092
        %v2132 = vunpack.c.l.b16 %v2093
        %v2133 = vunpack.c.l.b16 %v2094
        %v2134 = vunpack.c.l.b16 %v2095
        %v2135 = vunpack.c.l.b16 %v2096
        %v2136 = vunpack.c.l.b16 %v2097
        %v2137 = vunpack.c.l.b16 %v2098
        %v2138 = vunpack.c.l.b16 %v2099
        %v2139 = vpack.c.b16 %v2124, %v2123
        %v2140 = vpack.c.b16 %v2126, %v2125
        %v2141 = vpack.c.b16 %v2128, %v2127
        %v2142 = vpack.c.b16 %v2130, %v2129
        %v2143 = vpack.c.b16 %v2132, %v2131
        %v2144 = vpack.c.b16 %v2134, %v2133
        %v2145 = vpack.c.b16 %v2136, %v2135
        %v2146 = vpack.c.b16 %v2138, %v2137
        %2155 = vmatprep.subr.bf16.mxu0 0
        %2156 = vmatpush1.bf16.msra.mxu0 %v2139
        %2157 = vmatprep.subr.bf16.mxu0 0
        %2158 = vmatpush1.bf16.msra.mxu0 %v2140
        %2159 = vmatprep.subr.bf16.mxu0 0
        %2160 = vmatpush1.bf16.msra.mxu0 %v2141
        %2161 = vmatprep.subr.bf16.mxu0 0
        %2162 = vmatpush1.bf16.msra.mxu0 %v2142
        %2163 = vmatprep.subr.bf16.mxu0 0
        %2164 = vmatpush1.bf16.msra.mxu0 %v2143
        %2165 = vmatprep.subr.bf16.mxu0 0
        %2166 = vmatpush1.bf16.msra.mxu0 %v2144
        %2167 = vmatprep.subr.bf16.mxu0 0
        %2168 = vmatpush1.bf16.msra.mxu0 %v2145
        %2169 = vmatprep.subr.bf16.mxu0 0
        %2170 = vmatpush1.bf16.msra.mxu0 %v2146
        %2171 = vmatprep.subr.bf16.mxu0 0
        %2172 = vmatpush1.bf16.msra.mxu0 0
        %2173 = vmatprep.subr.bf16.mxu0 0
        %2174 = vmatpush1.bf16.msra.mxu0 0
        %2175 = vmatprep.subr.bf16.mxu0 0
        %2176 = vmatpush1.bf16.msra.mxu0 0
        %2177 = vmatprep.subr.bf16.mxu0 0
        %2178 = vmatpush1.bf16.msra.mxu0 0
        %2179 = vmatprep.subr.bf16.mxu0 0
        %2180 = vmatpush1.bf16.msra.mxu0 0
        %2181 = vmatprep.subr.bf16.mxu0 0
        %2182 = vmatpush1.bf16.msra.mxu0 0
        %2183 = vmatprep.subr.bf16.mxu0 0
        %2184 = vmatpush1.bf16.msra.mxu0 0
        %2185 = vmatprep.subr.bf16.mxu0 0
        %2186 = vmatpush1.bf16.msra.mxu0 0
        %2187 = vmatprep.mubr.bf16.mxu0 0
        %2188 = vmatmul.mubr.bf16.gmra.mrb[0].mxu0 %v2073
        %v2189 = vpop.f32.mrb[0].mxu0
        %v2190 = vadd.f32 %v2105, %v2189
        %v2191 = vpop.f32.mrb[0].mxu0
        %v2192 = vpop.f32.mrb[0].mxu0
        %v2193 = vadd.f32 %v2105, %v2192
        %v2194 = vpop.f32.mrb[0].mxu0
        %2195 = vmatprep.mubr.bf16.mxu0 0
        %2196 = vmatmul.mubr.bf16.gmra.mrb[0].mxu0 %v2076
        %v2197 = vpop.f32.mrb[0].mxu0
        %v2198 = vadd.f32 %v2105, %v2197
        %v2199 = vpop.f32.mrb[0].mxu0
        %v2200 = vpop.f32.mrb[0].mxu0
        %v2201 = vadd.f32 %v2105, %v2200
        %v2202 = vpop.f32.mrb[0].mxu0
        %2203 = vmatprep.mubr.bf16.mxu0 0
        %2204 = vmatmul.mubr.bf16.gmra.mrb[0].mxu0 %v2079
        %v2205 = vpop.f32.mrb[0].mxu0
        %v2206 = vadd.f32 %v2105, %v2205
        %v2207 = vpop.f32.mrb[0].mxu0
        %v2208 = vpop.f32.mrb[0].mxu0
        %v2209 = vadd.f32 %v2105, %v2208
        %v2210 = vpop.f32.mrb[0].mxu0
        %2211 = vmatprep.mubr.bf16.mxu0 0
        %2212 = vmatmul.mubr.bf16.gmra.mrb[0].mxu0 %v2082
        %v2213 = vpop.f32.mrb[0].mxu0
        %v2214 = vadd.f32 %v2105, %v2213
        %v2215 = vpop.f32.mrb[0].mxu0
        %v2216 = vpop.f32.mrb[0].mxu0
        %v2217 = vadd.f32 %v2105, %v2216
        %v2218 = vpop.f32.mrb[0].mxu0
        %2219 = vdwg.mxu0
        %2220 = vst [vmem:[%s315] sm:$0xff] %v2190
        %2221 = vst [vmem:[%s315 + $0x8] sm:$0xff] %v2193
        %2222 = vst [vmem:[%s315 + $0x10] sm:$0xff] %v2198
        %2223 = vst [vmem:[%s315 + $0x18] sm:$0xff] %v2201
        %2224 = vst [vmem:[%s315 + $0x20] sm:$0xff] %v2206
        %2225 = vst [vmem:[%s315 + $0x28] sm:$0xff] %v2209
        %2226 = vst [vmem:[%s315 + $0x30] sm:$0xff] %v2214
        %2227 = vst [vmem:[%s315 + $0x38] sm:$0xff] %v2217
        %s2228 = sand.u32 %s197, 1
        %s2229 = scalar_lea.sflag [#allocation5], %s2228
        %s2230 = sand.u32 %s197, 1
        %s2231 = smul.addr %s2230, 64
        %s2232 = scalar_lea.vmem [#allocation8], %s2231
        // Predicated region
        $region61: #{tpu_custom_call.1} parent=47 // pred_check
          %p2233 = pneg %p207
        $region62: #{tpu_custom_call.1} parent=47 // pred_check_branch
          %2235 = sbr.rel (%p2233) target = $region64
        $region63: #{tpu_custom_call.1} parent=47 // pred_region
          %s2236 = smul.u32 8, %s28
          %s2238 = ssub.s32 1024, 1024
          %2239 = vsyncadd %s2229, %s2238
          %s2240 = smul.addr %s27, 16
          %s2241 = sadd.s32 %s2236, %s2240
          %s2242 = smul.addr %s2241, 128
          %s2243 = scalar_lea.hbm %s7, %s2242
          %s2244 = sshll.u32 %s2232, 4
          %s2245 = int_to_ptr.vmem [resolvable:$true] %s2244
          %2250 = dma.vmem_to_hbm [thread:$0]  %s2245, 1024, %s2243, %s2229, 128, 128, 8
        $region64: #{tpu_custom_call.1} parent=47 // pred_fallthru
          _
      $region48: #{tpu_custom_call.1} parent=5 // pred_fallthru
        _
      %p2251 = scmp.le.s32.totalorder 2, %s18
      // Predicated region
      $region65: #{tpu_custom_call.1} parent=5 // pred_check
        %p2252 = pneg %p2251
      $region66: #{tpu_custom_call.1} parent=5 // pred_check_branch
        %2254 = sbr.rel (%p2252) target = $region68
      $region67: #{tpu_custom_call.1} parent=5 // pred_region
        %s2255 = ssub.s32 %s18, 2
        // Predicated region
        $region69: #{tpu_custom_call.1} parent=67 // pred_check
          %p2256 = pneg %p213
        $region70: #{tpu_custom_call.1} parent=67 // pred_check_branch
          %2258 = sbr.rel (%p2256) target = $region72
        $region71: #{tpu_custom_call.1} parent=67 // pred_region
          %s2259 = sand.u32 %s198, 1
          %s2260 = scalar_lea.sflag [#allocation5], %s2259
          %s2261 = sand.u32 %s198, 1
          %s2262 = smul.addr %s2261, 64
          %s2263 = scalar_lea.vmem [#allocation8], %s2262
          %2264 = dma.done %s2260, 1024
        $region72: #{tpu_custom_call.1} parent=67 // pred_fallthru
          _
      $region68: #{tpu_custom_call.1} parent=5 // pred_fallthru
        _
    $region6: #{tpu_custom_call.1} parent=1 // loop_footer
      %s22 = sadd.s32 1, %s18
    $region7: #{tpu_custom_call.1} parent=1 // loop_footer_branch
      %17 = sbr.rel target = $region3
    $region8: #{tpu_custom_call.1} parent=1 // loop_exit
      _
    %2265 = vsyncpa [#allocation4], 1
    %s2266 = scalar_lea.sflag [#allocation4], 1
    %2267 = vsyncpa %s2266, 1
    %2268 = vsyncpa [#allocation7], 1
    %2269 = vsyncpa [#allocation5], 1
    %s2270 = scalar_lea.sflag [#allocation5], 1
    %2271 = vsyncpa %s2270, 1

</llo_original>
